<compile_context>
chip_gen: v7x
topology: tpu7x:2x2x1
jax: 0.10.0
libtpu: 0.0.40
codegen_flags: <defaults>
</compile_context>

<pallas_src>
import functools
import math

import jax
import jax.numpy as jnp
from jax import lax
from jax.experimental import pallas as pl
from jax.experimental.pallas import tpu as pltpu


# ----------------------------------------------------------------------------
# Pallas kernel
# ----------------------------------------------------------------------------
def _attention_block_kernel(
    x_ref,      # (T, C)      input features for one batch element (f32)
    gmat_ref,   # (C, G)      one-hot channel -> group matrix (f32)
    gamma_ref,  # (1, C)      GroupNorm scale (f32)
    beta_ref,   # (1, C)      GroupNorm bias (f32)
    wq_ref,     # (H, C, ch)  Q weight, head-major, softmax scale folded in (bf16)
    wk_ref,     # (H, C, ch)  K weight, head-major (bf16)
    wv_ref,     # (H, C, ch)  V weight, head-major (bf16)
    bq_ref,     # (H, 1, ch)  Q bias, scale folded in (f32)
    bk_ref,     # (H, 1, ch)  K bias (f32)
    bv_ref,     # (H, 1, ch)  V bias (f32)
    wp_ref,     # (H, ch, C)  proj_out weight, head-major (bf16)
    bp_ref,     # (1, C)      proj_out bias (f32)
    o_ref,      # (TQ, C)     output query tile
    xn_scr,     # (T, C)      bf16 scratch: normalized activations
    k_scr,      # (H, T, ch)  bf16 scratch: keys (resident across query tiles)
    v_scr,      # (H, T, ch)  bf16 scratch: values
    *,
    num_heads: int,
    eps: float,
    tq: int,
):
    qi = pl.program_id(1)
    T, C = x_ref.shape

    # ---- once per batch element: GroupNorm + head-major K/V projection -----
    @pl.when(qi == 0)
    def _():
        x = x_ref[...].astype(jnp.float32)                          # (T, C)
        gmat = gmat_ref[...]                                        # (C, G)
        G = gmat.shape[1]
        inv_n = 1.0 / float(T * (C // G))
        dn_g = (((1,), (1,)), ((), ()))                             # contract G

        # centered two-pass GroupNorm statistics (avoids E[x^2]-E[x]^2 cancel)
        col_sum = jnp.sum(x, axis=0, keepdims=True)                 # (1, C)
        mean_g = jnp.dot(col_sum, gmat,
                         preferred_element_type=jnp.float32) * inv_n        # (1, G)
        mean_c = lax.dot_general(mean_g, gmat, dn_g,
                                 preferred_element_type=jnp.float32)        # (1, C)
        xc = x - mean_c
        col_sq = jnp.sum(xc * xc, axis=0, keepdims=True)            # (1, C)
        var_g = jnp.dot(col_sq, gmat,
                        preferred_element_type=jnp.float32) * inv_n         # (1, G)
        inv_g = lax.rsqrt(var_g + eps)
        inv_c = lax.dot_general(inv_g, gmat, dn_g,
                                preferred_element_type=jnp.float32)         # (1, C)

        xn = (xc * (inv_c * gamma_ref[...]) + beta_ref[...]).astype(jnp.bfloat16)
        xn_scr[...] = xn

        # head-major K / V projections; full-tile stores at static head index
        for h in range(num_heads):
            k_scr[h] = (jnp.dot(xn, wk_ref[h], preferred_element_type=jnp.float32)
                        + bk_ref[h]).astype(jnp.bfloat16)           # (T, ch)
            v_scr[h] = (jnp.dot(xn, wv_ref[h], preferred_element_type=jnp.float32)
                        + bv_ref[h]).astype(jnp.bfloat16)           # (T, ch)

    # ---- per query tile: attention + fused output projection ---------------
    row0 = pl.multiple_of(qi * tq, tq)
    xn_tile = xn_scr[pl.ds(row0, tq), :]                            # (TQ, C) bf16
    x_rows = x_ref[pl.ds(row0, tq), :].astype(jnp.float32)          # residual

    lane_dn = (((1,), (1,)), ((), ()))                              # A @ B.T

    def head_body(h, acc):
        # Q projection for this tile (softmax scale already folded into wq/bq)
        qh = (jnp.dot(xn_tile, wq_ref[h], preferred_element_type=jnp.float32)
              + bq_ref[h]).astype(jnp.bfloat16)                     # (TQ, ch)
        kh = k_scr[h]                                               # (T, ch)
        vh = v_scr[h]                                               # (T, ch)

        s = lax.dot_general(qh, kh, lane_dn,
                            preferred_element_type=jnp.float32)     # (TQ, T) f32
        s = s - jnp.max(s, axis=-1, keepdims=True)
        p = jnp.exp(s)
        p = p * pl.reciprocal(jnp.sum(p, axis=-1, keepdims=True), approx=False)

        oh = jnp.dot(p.astype(jnp.bfloat16), vh,
                     preferred_element_type=jnp.float32)            # (TQ, ch)
        # fold this head's contribution of the output projection immediately
        return acc + jnp.dot(oh.astype(jnp.bfloat16), wp_ref[h],
                             preferred_element_type=jnp.float32)    # (TQ, C)

    acc0 = x_rows + bp_ref[...]                    # residual + proj bias
    acc = lax.fori_loop(0, num_heads, head_body, acc0)
    o_ref[...] = acc.astype(o_ref.dtype)


# ----------------------------------------------------------------------------
# Wrapper helpers
# ----------------------------------------------------------------------------
def _tpu_vmem_capacity_bytes():
    try:
        info = pltpu.get_tpu_info()
        cap = getattr(info, "vmem_capacity_bytes", None)
        if cap:
            return int(cap)
    except Exception:
        pass
    return 64 * 1024 * 1024        # conservative fallback: v7x per-TC VMEM


def _pick_query_tile(T, cap):
    """Largest divisor of T that is <= cap, preferring multiples of 8."""
    cap = max(1, min(T, cap))
    fallback = None
    for d in range(cap, 0, -1):
        if T % d == 0:
            if d % 8 == 0:
                return d
            if fallback is None:
                fallback = d
    return fallback or T


def _vmem_bytes_estimate(T, C, tq, num_heads):
    est = 0
    est += 2 * (T * C * 4)                 # x input block, double-buffered (f32)
    est += 2 * (tq * C * 4)                # output tile, double-buffered (f32)
    est += 2 * (4 * C * C * 2)             # bf16 weight slabs, double-buffered
    est += 3 * T * C * 2                   # xn / k / v scratches (bf16)
    est += 2 * (tq * T * 4)                # score + prob matrices (f32)
    est += 4 * (tq * C * 4)                # accumulator / residual / misc (f32)
    est += T * C * 4                       # GroupNorm temporaries at qi == 0
    return est


# ----------------------------------------------------------------------------
# Wrapper
# ----------------------------------------------------------------------------
def attention_block(x, params, *, num_heads, num_groups=32, eps=1e-5):
    """x: [B, C, H, W] (NCHW, like the PyTorch module)."""
    B, C, Hs, Ws = x.shape
    T = Hs * Ws
    G = num_groups
    assert C % G == 0 and C % num_heads == 0
    ch = C // num_heads

    # Generation-aware tiling / VMEM budget (v7x: 64 MiB/TC, v5e/v6e: 128 MiB).
    vmem_cap = _tpu_vmem_capacity_bytes()
    tq_cap = 1024 if vmem_cap > (64 << 20) else 512
    tq = _pick_query_tile(T, tq_cap)
    nq = T // tq

    gamma, beta, wqkv, bqkv, wproj, bproj = (
        params["gamma"], params["beta"], params["wqkv"], params["bqkv"],
        params["wproj"], params["bproj"],
    )

    # JAX glue: NCHW -> [B, T, C]
    # TODO(synk): consume (B, C, T) directly to avoid this HBM transpose pass.
    x_btc = jnp.transpose(x.reshape(B, C, T), (0, 2, 1))

    # one-hot channel -> group matrix (C, G)
    ch_ids = jnp.arange(C) // (C // G)
    gmat = (ch_ids[:, None] == jnp.arange(G)[None, :]).astype(jnp.float32)

    gamma2 = gamma.reshape(1, C).astype(jnp.float32)
    beta2 = beta.reshape(1, C).astype(jnp.float32)

    # PyTorch qkv weight rows are per-head interleaved [q_h | k_h | v_h];
    # split them into head-major slabs and fold the full 1/sqrt(ch) softmax
    # scale into the Q weights and bias (one-time constant fold).
    inv_sqrt_ch = 1.0 / math.sqrt(ch)
    w3 = wqkv.astype(jnp.float32).reshape(num_heads, 3, ch, C)      # [h, qkv, j, c]
    b3 = bqkv.astype(jnp.float32).reshape(num_heads, 3, ch)
    wq_hm = (jnp.transpose(w3[:, 0], (0, 2, 1)) * inv_sqrt_ch).astype(jnp.bfloat16)
    wk_hm = jnp.transpose(w3[:, 1], (0, 2, 1)).astype(jnp.bfloat16)      # (H, C, ch)
    wv_hm = jnp.transpose(w3[:, 2], (0, 2, 1)).astype(jnp.bfloat16)
    bq_hm = (b3[:, 0] * inv_sqrt_ch).reshape(num_heads, 1, ch).astype(jnp.float32)
    bk_hm = b3[:, 1].reshape(num_heads, 1, ch).astype(jnp.float32)
    bv_hm = b3[:, 2].reshape(num_heads, 1, ch).astype(jnp.float32)
    wp_hm = jnp.transpose(
        wproj.astype(jnp.float32).reshape(C, num_heads, ch), (1, 2, 0)
    ).astype(jnp.bfloat16)                                               # (H, ch, C)
    bp2 = bproj.reshape(1, C).astype(jnp.float32)

    kernel = functools.partial(_attention_block_kernel,
                               num_heads=num_heads, eps=eps, tq=tq)

    vmem_est = _vmem_bytes_estimate(T, C, tq, num_heads)
    vmem_limit = int(min(max(2 * vmem_est, 32 << 20), int(0.75 * vmem_cap)))

    out_btc = pl.pallas_call(
        kernel,
        out_shape=jax.ShapeDtypeStruct((B, T, C), x.dtype),
        grid_spec=pltpu.PrefetchScalarGridSpec(
            num_scalar_prefetch=0,
            grid=(B, nq),
            in_specs=[
                pl.BlockSpec((None, T, C), lambda b, q: (b, 0, 0)),          # x
                pl.BlockSpec((C, G), lambda b, q: (0, 0)),                   # gmat
                pl.BlockSpec((1, C), lambda b, q: (0, 0)),                   # gamma
                pl.BlockSpec((1, C), lambda b, q: (0, 0)),                   # beta
                pl.BlockSpec((num_heads, C, ch), lambda b, q: (0, 0, 0)),    # wq
                pl.BlockSpec((num_heads, C, ch), lambda b, q: (0, 0, 0)),    # wk
                pl.BlockSpec((num_heads, C, ch), lambda b, q: (0, 0, 0)),    # wv
                pl.BlockSpec((num_heads, 1, ch), lambda b, q: (0, 0, 0)),    # bq
                pl.BlockSpec((num_heads, 1, ch), lambda b, q: (0, 0, 0)),    # bk
                pl.BlockSpec((num_heads, 1, ch), lambda b, q: (0, 0, 0)),    # bv
                pl.BlockSpec((num_heads, ch, C), lambda b, q: (0, 0, 0)),    # wp
                pl.BlockSpec((1, C), lambda b, q: (0, 0)),                   # bp
            ],
            out_specs=pl.BlockSpec((None, tq, C), lambda b, q: (b, q, 0)),
            scratch_shapes=[
                pltpu.VMEM((T, C), jnp.bfloat16),                # normalized x
                pltpu.VMEM((num_heads, T, ch), jnp.bfloat16),    # K (head-major)
                pltpu.VMEM((num_heads, T, ch), jnp.bfloat16),    # V (head-major)
            ],
        ),
        compiler_params=pltpu.CompilerParams(
            dimension_semantics=("parallel", "arbitrary"),
            vmem_limit_bytes=vmem_limit,
        ),
    )(x_btc, gmat, gamma2, beta2, wq_hm, wk_hm, wv_hm,
      bq_hm, bk_hm, bv_hm, wp_hm, bp2)

    # [B, T, C] -> NCHW
    return jnp.transpose(out_btc, (0, 2, 1)).reshape(B, C, Hs, Ws)


# ----------------------------------------------------------------------------
# Pure-JAX reference (mirrors the PyTorch forward exactly, all f32)
# ----------------------------------------------------------------------------
def attention_block_ref(x, params, *, num_heads, num_groups=32, eps=1e-5):
    B, C, Hs, Ws = x.shape
    T = Hs * Ws
    G = num_groups
    ch = C // num_heads
    xr = x.reshape(B, C, T).astype(jnp.float32)

    # GroupNorm
    xg = xr.reshape(B, G, (C // G) * T)
    mean = jnp.mean(xg, axis=-1, keepdims=True)
    var = jnp.var(xg, axis=-1, keepdims=True)
    xn = ((xg - mean) / jnp.sqrt(var + eps)).reshape(B, C, T)
    xn = xn * params["gamma"][None, :, None] + params["beta"][None, :, None]

    # qkv 1x1 conv
    qkv = jnp.einsum("oc,bct->bot", params["wqkv"], xn) + params["bqkv"][None, :, None]
    qkv = qkv.reshape(B * num_heads, 3 * ch, T)
    q, k, v = jnp.split(qkv, 3, axis=1)
    scale = 1.0 / math.sqrt(math.sqrt(ch))
    w = jnp.einsum("bct,bcs->bts", q * scale, k * scale)
    w = jax.nn.softmax(w.astype(jnp.float32), axis=-1)
    h = jnp.einsum("bts,bcs->bct", w, v)
    h = h.reshape(B, C, T)

    # proj_out 1x1 conv
    h = jnp.einsum("oc,bct->bot", params["wproj"], h) + params["bproj"][None, :, None]
    return (xr + h).reshape(B, C, Hs, Ws)


# ----------------------------------------------------------------------------
# Main
# ----------------------------------------------------------------------------
if __name__ == "__main__":
    # Small shapes consistent with the module: GroupNorm(32, C) requires
    # C % 32 == 0, and C % num_heads == 0.
    B, C, H, W = 2, 64, 8, 8
    NUM_HEADS = 4
    NUM_GROUPS = 32

    key = jax.random.PRNGKey(0)
    kx, kg, kb, kw1, kb1, kw2, kb2 = jax.random.split(key, 7)

    x = jax.random.normal(kx, (B, C, H, W), dtype=jnp.float32)

    # NOTE: the PyTorch module zero-initializes proj_out (zero_module) and uses
    # gamma=1 / beta=0 for GroupNorm; small random values are used here so the
    # whole compute path is actually exercised.
    params = {
        "gamma": 1.0 + 0.1 * jax.random.normal(kg, (C,), dtype=jnp.float32),
        "beta": 0.1 * jax.random.normal(kb, (C,), dtype=jnp.float32),
        "wqkv": 0.1 * jax.random.normal(kw1, (3 * C, C), dtype=jnp.float32),
        "bqkv": 0.1 * jax.random.normal(kb1, (3 * C,), dtype=jnp.float32),
        "wproj": 0.1 * jax.random.normal(kw2, (C, C), dtype=jnp.float32),
        "bproj": 0.1 * jax.random.normal(kb2, (C,), dtype=jnp.float32),
    }

    out = attention_block(x, params, num_heads=NUM_HEADS, num_groups=NUM_GROUPS)
    out = jax.block_until_ready(out)

    ref = attention_block_ref(x, params, num_heads=NUM_HEADS, num_groups=NUM_GROUPS)
    ref = jax.block_until_ready(ref)

    assert out.shape == (B, C, H, W)
    # bf16 matmul inputs in the kernel vs. an all-f32 reference -> loose
    # absolute tolerance (observed errors are ~1e-2 level at this scale).
    max_err = float(jnp.max(jnp.abs(out - ref)))
    assert max_err < 6e-2, f"max abs err {max_err}"

    print("KERNEL_OK")
</pallas_src>

<mosaic_0001>
module attributes {stable_mosaic.version = 11 : i64} {
  func.func @_attention_block_kernel(%arg0: i32, %arg1: i32, %arg2: memref<1x64x64xf32, #tpu.memory_space<vmem>>, %arg3: memref<64x32xf32, #tpu.memory_space<vmem>>, %arg4: memref<1x64xf32, #tpu.memory_space<vmem>>, %arg5: memref<1x64xf32, #tpu.memory_space<vmem>>, %arg6: memref<4x64x16xbf16, #tpu.memory_space<vmem>>, %arg7: memref<4x64x16xbf16, #tpu.memory_space<vmem>>, %arg8: memref<4x64x16xbf16, #tpu.memory_space<vmem>>, %arg9: memref<4x1x16xf32, #tpu.memory_space<vmem>>, %arg10: memref<4x1x16xf32, #tpu.memory_space<vmem>>, %arg11: memref<4x1x16xf32, #tpu.memory_space<vmem>>, %arg12: memref<4x16x64xbf16, #tpu.memory_space<vmem>>, %arg13: memref<1x64xf32, #tpu.memory_space<vmem>>, %arg14: memref<1x64x64xf32, #tpu.memory_space<vmem>>, %arg15: memref<64x64xbf16, #tpu.memory_space<vmem>>, %arg16: memref<4x64x16xbf16, #tpu.memory_space<vmem>>, %arg17: memref<4x64x16xbf16, #tpu.memory_space<vmem>>) attributes {dimension_semantics = [#tpu.dimension_semantics<parallel>, #tpu.dimension_semantics<arbitrary>], iteration_bounds = array<i64: 2, 1>, scalar_prefetch = 0 : i64, scratch_operands = 3 : i64, tpu.core_type = #tpu.core_type<tc>, window_params = [{transform_indices = @transform_0, window_bounds = array<i64: 1, 64, 64>}, {pipeline_mode = #tpu.pipeline_mode<synchronous>, transform_indices = @transform_1, window_bounds = array<i64: 64, 32>}, {pipeline_mode = #tpu.pipeline_mode<synchronous>, transform_indices = @transform_2, window_bounds = array<i64: 1, 64>}, {pipeline_mode = #tpu.pipeline_mode<synchronous>, transform_indices = @transform_3, window_bounds = array<i64: 1, 64>}, {pipeline_mode = #tpu.pipeline_mode<synchronous>, transform_indices = @transform_4, window_bounds = array<i64: 4, 64, 16>}, {pipeline_mode = #tpu.pipeline_mode<synchronous>, transform_indices = @transform_5, window_bounds = array<i64: 4, 64, 16>}, {pipeline_mode = #tpu.pipeline_mode<synchronous>, transform_indices = @transform_6, window_bounds = array<i64: 4, 64, 16>}, {pipeline_mode = #tpu.pipeline_mode<synchronous>, transform_indices = @transform_7, window_bounds = array<i64: 4, 1, 16>}, {pipeline_mode = #tpu.pipeline_mode<synchronous>, transform_indices = @transform_8, window_bounds = array<i64: 4, 1, 16>}, {pipeline_mode = #tpu.pipeline_mode<synchronous>, transform_indices = @transform_9, window_bounds = array<i64: 4, 1, 16>}, {pipeline_mode = #tpu.pipeline_mode<synchronous>, transform_indices = @transform_10, window_bounds = array<i64: 4, 16, 64>}, {pipeline_mode = #tpu.pipeline_mode<synchronous>, transform_indices = @transform_11, window_bounds = array<i64: 1, 64>}, {transform_indices = @transform_12, window_bounds = array<i64: 1, 64, 64>}]} {
    %c0_i32 = arith.constant 0 : i32
    %0 = arith.cmpi eq, %arg1, %c0_i32 : i32
    %1 = arith.extui %0 : i1 to i32
    %c0_i32_0 = arith.constant 0 : i32
    %2 = arith.cmpi ne, %1, %c0_i32_0 : i32
    scf.if %2 {
      %c0_10 = arith.constant 0 : index
      %c0_11 = arith.constant 0 : index
      %c0_12 = arith.constant 0 : index
      %18 = vector.load %arg2[%c0_10, %c0_11, %c0_12] : memref<1x64x64xf32, #tpu.memory_space<vmem>>, vector<1x64x64xf32>
      %19 = vector.shape_cast %18 : vector<1x64x64xf32> to vector<64x64xf32>
      %c0_13 = arith.constant 0 : index
      %c0_14 = arith.constant 0 : index
      %20 = vector.load %arg3[%c0_13, %c0_14] : memref<64x32xf32, #tpu.memory_space<vmem>>, vector<64x32xf32>
      %cst = arith.constant dense<0.000000e+00> : vector<64xf32>
      %21 = vector.multi_reduction <add>, %19, %cst [0] : vector<64x64xf32> to vector<64xf32>
      %22 = vector.shape_cast %21 : vector<64xf32> to vector<1x64xf32>
      %cst_15 = arith.constant dense<0.000000e+00> : vector<1x32xf32>
      %23 = tpu.matmul %22, %20, %cst_15 {dimension_numbers = #tpu.dot_dimension_numbers<[1], [0], [0], [1], [0, 0, 1, 1], [], []>} : vector<1x64xf32>, vector<64x32xf32>, vector<1x32xf32> -> vector<1x32xf32>
      %cst_16 = arith.constant 7.812500e-03 : f32
      %24 = vector.broadcast %cst_16 : f32 to vector<1x32xf32>
      %25 = arith.mulf %23, %24 : vector<1x32xf32>
      %cst_17 = arith.constant dense<0.000000e+00> : vector<1x64xf32>
      %26 = tpu.matmul %25, %20, %cst_17 {dimension_numbers = #tpu.dot_dimension_numbers<[1], [1], [0], [0], [0, 0, 1, 0], [], []>} : vector<1x32xf32>, vector<64x32xf32>, vector<1x64xf32> -> vector<1x64xf32>
      %27 = vector.broadcast %26 : vector<1x64xf32> to vector<64x64xf32>
      %28 = arith.subf %19, %27 : vector<64x64xf32>
      %29 = arith.mulf %28, %28 : vector<64x64xf32>
      %cst_18 = arith.constant dense<0.000000e+00> : vector<64xf32>
      %30 = vector.multi_reduction <add>, %29, %cst_18 [0] : vector<64x64xf32> to vector<64xf32>
      %31 = vector.shape_cast %30 : vector<64xf32> to vector<1x64xf32>
      %cst_19 = arith.constant dense<0.000000e+00> : vector<1x32xf32>
      %32 = tpu.matmul %31, %20, %cst_19 {dimension_numbers = #tpu.dot_dimension_numbers<[1], [0], [0], [1], [0, 0, 1, 1], [], []>} : vector<1x64xf32>, vector<64x32xf32>, vector<1x32xf32> -> vector<1x32xf32>
      %cst_20 = arith.constant 7.812500e-03 : f32
      %33 = vector.broadcast %cst_20 : f32 to vector<1x32xf32>
      %34 = arith.mulf %32, %33 : vector<1x32xf32>
      %cst_21 = arith.constant 9.99999974E-6 : f32
      %35 = vector.broadcast %cst_21 : f32 to vector<1x32xf32>
      %36 = arith.addf %34, %35 : vector<1x32xf32>
      %37 = math.rsqrt %36 : vector<1x32xf32>
      %cst_22 = arith.constant dense<0.000000e+00> : vector<1x64xf32>
      %38 = tpu.matmul %37, %20, %cst_22 {dimension_numbers = #tpu.dot_dimension_numbers<[1], [1], [0], [0], [0, 0, 1, 0], [], []>} : vector<1x32xf32>, vector<64x32xf32>, vector<1x64xf32> -> vector<1x64xf32>
      %c0_23 = arith.constant 0 : index
      %c0_24 = arith.constant 0 : index
      %39 = vector.load %arg4[%c0_23, %c0_24] : memref<1x64xf32, #tpu.memory_space<vmem>>, vector<1x64xf32>
      %40 = arith.mulf %38, %39 : vector<1x64xf32>
      %41 = vector.broadcast %40 : vector<1x64xf32> to vector<64x64xf32>
      %42 = arith.mulf %28, %41 : vector<64x64xf32>
      %c0_25 = arith.constant 0 : index
      %c0_26 = arith.constant 0 : index
      %43 = vector.load %arg5[%c0_25, %c0_26] : memref<1x64xf32, #tpu.memory_space<vmem>>, vector<1x64xf32>
      %44 = vector.broadcast %43 : vector<1x64xf32> to vector<64x64xf32>
      %45 = arith.addf %42, %44 : vector<64x64xf32>
      %46 = arith.truncf %45 : vector<64x64xf32> to vector<64x64xbf16>
      %c0_27 = arith.constant 0 : index
      %c0_28 = arith.constant 0 : index
      %47 = vector.load %arg15[%c0_27, %c0_28] : memref<64x64xbf16, #tpu.memory_space<vmem>>, vector<64x64xbf16>
      tpu.vector_store %arg15[%c0_27, %c0_28], %46 {strides = array<i32>} : memref<64x64xbf16, #tpu.memory_space<vmem>>, vector<64x64xbf16>,
      %c0_29 = arith.constant 0 : index
      %c0_30 = arith.constant 0 : index
      %c0_31 = arith.constant 0 : index
      %48 = vector.load %arg7[%c0_29, %c0_30, %c0_31] : memref<4x64x16xbf16, #tpu.memory_space<vmem>>, vector<1x64x16xbf16>
      %49 = vector.shape_cast %48 : vector<1x64x16xbf16> to vector<64x16xbf16>
      %cst_32 = arith.constant dense<0.000000e+00> : vector<64x16xf32>
      %50 = tpu.matmul %46, %49, %cst_32 {dimension_numbers = #tpu.dot_dimension_numbers<[1], [0], [0], [1], [0, 0, 1, 1], [], []>} : vector<64x64xbf16>, vector<64x16xbf16>, vector<64x16xf32> -> vector<64x16xf32>
      %c0_33 = arith.constant 0 : index
      %c0_34 = arith.constant 0 : index
      %c0_35 = arith.constant 0 : index
      %51 = vector.load %arg10[%c0_33, %c0_34, %c0_35] : memref<4x1x16xf32, #tpu.memory_space<vmem>>, vector<1x1x16xf32>
      %52 = vector.shape_cast %51 : vector<1x1x16xf32> to vector<1x16xf32>
      %53 = vector.broadcast %52 : vector<1x16xf32> to vector<64x16xf32>
      %54 = arith.addf %50, %53 : vector<64x16xf32>
      %55 = arith.truncf %54 : vector<64x16xf32> to vector<64x16xbf16>
      %c0_36 = arith.constant 0 : index
      %c0_37 = arith.constant 0 : index
      %c0_38 = arith.constant 0 : index
      %56 = vector.load %arg16[%c0_36, %c0_37, %c0_38] : memref<4x64x16xbf16, #tpu.memory_space<vmem>>, vector<1x64x16xbf16>
      %57 = vector.shape_cast %56 : vector<1x64x16xbf16> to vector<64x16xbf16>
      %58 = vector.shape_cast %55 : vector<64x16xbf16> to vector<1x64x16xbf16>
      tpu.vector_store %arg16[%c0_36, %c0_37, %c0_38], %58 {strides = array<i32>} : memref<4x64x16xbf16, #tpu.memory_space<vmem>>, vector<1x64x16xbf16>,
      %c0_39 = arith.constant 0 : index
      %c0_40 = arith.constant 0 : index
      %c0_41 = arith.constant 0 : index
      %59 = vector.load %arg8[%c0_39, %c0_40, %c0_41] : memref<4x64x16xbf16, #tpu.memory_space<vmem>>, vector<1x64x16xbf16>
      %60 = vector.shape_cast %59 : vector<1x64x16xbf16> to vector<64x16xbf16>
      %cst_42 = arith.constant dense<0.000000e+00> : vector<64x16xf32>
      %61 = tpu.matmul %46, %60, %cst_42 {dimension_numbers = #tpu.dot_dimension_numbers<[1], [0], [0], [1], [0, 0, 1, 1], [], []>} : vector<64x64xbf16>, vector<64x16xbf16>, vector<64x16xf32> -> vector<64x16xf32>
      %c0_43 = arith.constant 0 : index
      %c0_44 = arith.constant 0 : index
      %c0_45 = arith.constant 0 : index
      %62 = vector.load %arg11[%c0_43, %c0_44, %c0_45] : memref<4x1x16xf32, #tpu.memory_space<vmem>>, vector<1x1x16xf32>
      %63 = vector.shape_cast %62 : vector<1x1x16xf32> to vector<1x16xf32>
      %64 = vector.broadcast %63 : vector<1x16xf32> to vector<64x16xf32>
      %65 = arith.addf %61, %64 : vector<64x16xf32>
      %66 = arith.truncf %65 : vector<64x16xf32> to vector<64x16xbf16>
      %c0_46 = arith.constant 0 : index
      %c0_47 = arith.constant 0 : index
      %c0_48 = arith.constant 0 : index
      %67 = vector.load %arg17[%c0_46, %c0_47, %c0_48] : memref<4x64x16xbf16, #tpu.memory_space<vmem>>, vector<1x64x16xbf16>
      %68 = vector.shape_cast %67 : vector<1x64x16xbf16> to vector<64x16xbf16>
      %69 = vector.shape_cast %66 : vector<64x16xbf16> to vector<1x64x16xbf16>
      tpu.vector_store %arg17[%c0_46, %c0_47, %c0_48], %69 {strides = array<i32>} : memref<4x64x16xbf16, #tpu.memory_space<vmem>>, vector<1x64x16xbf16>,
      %c1 = arith.constant 1 : index
      %c0_49 = arith.constant 0 : index
      %c0_50 = arith.constant 0 : index
      %70 = vector.load %arg7[%c1, %c0_49, %c0_50] : memref<4x64x16xbf16, #tpu.memory_space<vmem>>, vector<1x64x16xbf16>
      %71 = vector.shape_cast %70 : vector<1x64x16xbf16> to vector<64x16xbf16>
      %cst_51 = arith.constant dense<0.000000e+00> : vector<64x16xf32>
      %72 = tpu.matmul %46, %71, %cst_51 {dimension_numbers = #tpu.dot_dimension_numbers<[1], [0], [0], [1], [0, 0, 1, 1], [], []>} : vector<64x64xbf16>, vector<64x16xbf16>, vector<64x16xf32> -> vector<64x16xf32>
      %c1_52 = arith.constant 1 : index
      %c0_53 = arith.constant 0 : index
      %c0_54 = arith.constant 0 : index
      %73 = vector.load %arg10[%c1_52, %c0_53, %c0_54] : memref<4x1x16xf32, #tpu.memory_space<vmem>>, vector<1x1x16xf32>
      %74 = vector.shape_cast %73 : vector<1x1x16xf32> to vector<1x16xf32>
      %75 = vector.broadcast %74 : vector<1x16xf32> to vector<64x16xf32>
      %76 = arith.addf %72, %75 : vector<64x16xf32>
      %77 = arith.truncf %76 : vector<64x16xf32> to vector<64x16xbf16>
      %c1_55 = arith.constant 1 : index
      %c0_56 = arith.constant 0 : index
      %c0_57 = arith.constant 0 : index
      %78 = vector.load %arg16[%c1_55, %c0_56, %c0_57] : memref<4x64x16xbf16, #tpu.memory_space<vmem>>, vector<1x64x16xbf16>
      %79 = vector.shape_cast %78 : vector<1x64x16xbf16> to vector<64x16xbf16>
      %80 = vector.shape_cast %77 : vector<64x16xbf16> to vector<1x64x16xbf16>
      tpu.vector_store %arg16[%c1_55, %c0_56, %c0_57], %80 {strides = array<i32>} : memref<4x64x16xbf16, #tpu.memory_space<vmem>>, vector<1x64x16xbf16>,
      %c1_58 = arith.constant 1 : index
      %c0_59 = arith.constant 0 : index
      %c0_60 = arith.constant 0 : index
      %81 = vector.load %arg8[%c1_58, %c0_59, %c0_60] : memref<4x64x16xbf16, #tpu.memory_space<vmem>>, vector<1x64x16xbf16>
      %82 = vector.shape_cast %81 : vector<1x64x16xbf16> to vector<64x16xbf16>
      %cst_61 = arith.constant dense<0.000000e+00> : vector<64x16xf32>
      %83 = tpu.matmul %46, %82, %cst_61 {dimension_numbers = #tpu.dot_dimension_numbers<[1], [0], [0], [1], [0, 0, 1, 1], [], []>} : vector<64x64xbf16>, vector<64x16xbf16>, vector<64x16xf32> -> vector<64x16xf32>
      %c1_62 = arith.constant 1 : index
      %c0_63 = arith.constant 0 : index
      %c0_64 = arith.constant 0 : index
      %84 = vector.load %arg11[%c1_62, %c0_63, %c0_64] : memref<4x1x16xf32, #tpu.memory_space<vmem>>, vector<1x1x16xf32>
      %85 = vector.shape_cast %84 : vector<1x1x16xf32> to vector<1x16xf32>
      %86 = vector.broadcast %85 : vector<1x16xf32> to vector<64x16xf32>
      %87 = arith.addf %83, %86 : vector<64x16xf32>
      %88 = arith.truncf %87 : vector<64x16xf32> to vector<64x16xbf16>
      %c1_65 = arith.constant 1 : index
      %c0_66 = arith.constant 0 : index
      %c0_67 = arith.constant 0 : index
      %89 = vector.load %arg17[%c1_65, %c0_66, %c0_67] : memref<4x64x16xbf16, #tpu.memory_space<vmem>>, vector<1x64x16xbf16>
      %90 = vector.shape_cast %89 : vector<1x64x16xbf16> to vector<64x16xbf16>
      %91 = vector.shape_cast %88 : vector<64x16xbf16> to vector<1x64x16xbf16>
      tpu.vector_store %arg17[%c1_65, %c0_66, %c0_67], %91 {strides = array<i32>} : memref<4x64x16xbf16, #tpu.memory_space<vmem>>, vector<1x64x16xbf16>,
      %c2 = arith.constant 2 : index
      %c0_68 = arith.constant 0 : index
      %c0_69 = arith.constant 0 : index
      %92 = vector.load %arg7[%c2, %c0_68, %c0_69] : memref<4x64x16xbf16, #tpu.memory_space<vmem>>, vector<1x64x16xbf16>
      %93 = vector.shape_cast %92 : vector<1x64x16xbf16> to vector<64x16xbf16>
      %cst_70 = arith.constant dense<0.000000e+00> : vector<64x16xf32>
      %94 = tpu.matmul %46, %93, %cst_70 {dimension_numbers = #tpu.dot_dimension_numbers<[1], [0], [0], [1], [0, 0, 1, 1], [], []>} : vector<64x64xbf16>, vector<64x16xbf16>, vector<64x16xf32> -> vector<64x16xf32>
      %c2_71 = arith.constant 2 : index
      %c0_72 = arith.constant 0 : index
      %c0_73 = arith.constant 0 : index
      %95 = vector.load %arg10[%c2_71, %c0_72, %c0_73] : memref<4x1x16xf32, #tpu.memory_space<vmem>>, vector<1x1x16xf32>
      %96 = vector.shape_cast %95 : vector<1x1x16xf32> to vector<1x16xf32>
      %97 = vector.broadcast %96 : vector<1x16xf32> to vector<64x16xf32>
      %98 = arith.addf %94, %97 : vector<64x16xf32>
      %99 = arith.truncf %98 : vector<64x16xf32> to vector<64x16xbf16>
      %c2_74 = arith.constant 2 : index
      %c0_75 = arith.constant 0 : index
      %c0_76 = arith.constant 0 : index
      %100 = vector.load %arg16[%c2_74, %c0_75, %c0_76] : memref<4x64x16xbf16, #tpu.memory_space<vmem>>, vector<1x64x16xbf16>
      %101 = vector.shape_cast %100 : vector<1x64x16xbf16> to vector<64x16xbf16>
      %102 = vector.shape_cast %99 : vector<64x16xbf16> to vector<1x64x16xbf16>
      tpu.vector_store %arg16[%c2_74, %c0_75, %c0_76], %102 {strides = array<i32>} : memref<4x64x16xbf16, #tpu.memory_space<vmem>>, vector<1x64x16xbf16>,
      %c2_77 = arith.constant 2 : index
      %c0_78 = arith.constant 0 : index
      %c0_79 = arith.constant 0 : index
      %103 = vector.load %arg8[%c2_77, %c0_78, %c0_79] : memref<4x64x16xbf16, #tpu.memory_space<vmem>>, vector<1x64x16xbf16>
      %104 = vector.shape_cast %103 : vector<1x64x16xbf16> to vector<64x16xbf16>
      %cst_80 = arith.constant dense<0.000000e+00> : vector<64x16xf32>
      %105 = tpu.matmul %46, %104, %cst_80 {dimension_numbers = #tpu.dot_dimension_numbers<[1], [0], [0], [1], [0, 0, 1, 1], [], []>} : vector<64x64xbf16>, vector<64x16xbf16>, vector<64x16xf32> -> vector<64x16xf32>
      %c2_81 = arith.constant 2 : index
      %c0_82 = arith.constant 0 : index
      %c0_83 = arith.constant 0 : index
      %106 = vector.load %arg11[%c2_81, %c0_82, %c0_83] : memref<4x1x16xf32, #tpu.memory_space<vmem>>, vector<1x1x16xf32>
      %107 = vector.shape_cast %106 : vector<1x1x16xf32> to vector<1x16xf32>
      %108 = vector.broadcast %107 : vector<1x16xf32> to vector<64x16xf32>
      %109 = arith.addf %105, %108 : vector<64x16xf32>
      %110 = arith.truncf %109 : vector<64x16xf32> to vector<64x16xbf16>
      %c2_84 = arith.constant 2 : index
      %c0_85 = arith.constant 0 : index
      %c0_86 = arith.constant 0 : index
      %111 = vector.load %arg17[%c2_84, %c0_85, %c0_86] : memref<4x64x16xbf16, #tpu.memory_space<vmem>>, vector<1x64x16xbf16>
      %112 = vector.shape_cast %111 : vector<1x64x16xbf16> to vector<64x16xbf16>
      %113 = vector.shape_cast %110 : vector<64x16xbf16> to vector<1x64x16xbf16>
      tpu.vector_store %arg17[%c2_84, %c0_85, %c0_86], %113 {strides = array<i32>} : memref<4x64x16xbf16, #tpu.memory_space<vmem>>, vector<1x64x16xbf16>,
      %c3 = arith.constant 3 : index
      %c0_87 = arith.constant 0 : index
      %c0_88 = arith.constant 0 : index
      %114 = vector.load %arg7[%c3, %c0_87, %c0_88] : memref<4x64x16xbf16, #tpu.memory_space<vmem>>, vector<1x64x16xbf16>
      %115 = vector.shape_cast %114 : vector<1x64x16xbf16> to vector<64x16xbf16>
      %cst_89 = arith.constant dense<0.000000e+00> : vector<64x16xf32>
      %116 = tpu.matmul %46, %115, %cst_89 {dimension_numbers = #tpu.dot_dimension_numbers<[1], [0], [0], [1], [0, 0, 1, 1], [], []>} : vector<64x64xbf16>, vector<64x16xbf16>, vector<64x16xf32> -> vector<64x16xf32>
      %c3_90 = arith.constant 3 : index
      %c0_91 = arith.constant 0 : index
      %c0_92 = arith.constant 0 : index
      %117 = vector.load %arg10[%c3_90, %c0_91, %c0_92] : memref<4x1x16xf32, #tpu.memory_space<vmem>>, vector<1x1x16xf32>
      %118 = vector.shape_cast %117 : vector<1x1x16xf32> to vector<1x16xf32>
      %119 = vector.broadcast %118 : vector<1x16xf32> to vector<64x16xf32>
      %120 = arith.addf %116, %119 : vector<64x16xf32>
      %121 = arith.truncf %120 : vector<64x16xf32> to vector<64x16xbf16>
      %c3_93 = arith.constant 3 : index
      %c0_94 = arith.constant 0 : index
      %c0_95 = arith.constant 0 : index
      %122 = vector.load %arg16[%c3_93, %c0_94, %c0_95] : memref<4x64x16xbf16, #tpu.memory_space<vmem>>, vector<1x64x16xbf16>
      %123 = vector.shape_cast %122 : vector<1x64x16xbf16> to vector<64x16xbf16>
      %124 = vector.shape_cast %121 : vector<64x16xbf16> to vector<1x64x16xbf16>
      tpu.vector_store %arg16[%c3_93, %c0_94, %c0_95], %124 {strides = array<i32>} : memref<4x64x16xbf16, #tpu.memory_space<vmem>>, vector<1x64x16xbf16>,
      %c3_96 = arith.constant 3 : index
      %c0_97 = arith.constant 0 : index
      %c0_98 = arith.constant 0 : index
      %125 = vector.load %arg8[%c3_96, %c0_97, %c0_98] : memref<4x64x16xbf16, #tpu.memory_space<vmem>>, vector<1x64x16xbf16>
      %126 = vector.shape_cast %125 : vector<1x64x16xbf16> to vector<64x16xbf16>
      %cst_99 = arith.constant dense<0.000000e+00> : vector<64x16xf32>
      %127 = tpu.matmul %46, %126, %cst_99 {dimension_numbers = #tpu.dot_dimension_numbers<[1], [0], [0], [1], [0, 0, 1, 1], [], []>} : vector<64x64xbf16>, vector<64x16xbf16>, vector<64x16xf32> -> vector<64x16xf32>
      %c3_100 = arith.constant 3 : index
      %c0_101 = arith.constant 0 : index
      %c0_102 = arith.constant 0 : index
      %128 = vector.load %arg11[%c3_100, %c0_101, %c0_102] : memref<4x1x16xf32, #tpu.memory_space<vmem>>, vector<1x1x16xf32>
      %129 = vector.shape_cast %128 : vector<1x1x16xf32> to vector<1x16xf32>
      %130 = vector.broadcast %129 : vector<1x16xf32> to vector<64x16xf32>
      %131 = arith.addf %127, %130 : vector<64x16xf32>
      %132 = arith.truncf %131 : vector<64x16xf32> to vector<64x16xbf16>
      %c3_103 = arith.constant 3 : index
      %c0_104 = arith.constant 0 : index
      %c0_105 = arith.constant 0 : index
      %133 = vector.load %arg17[%c3_103, %c0_104, %c0_105] : memref<4x64x16xbf16, #tpu.memory_space<vmem>>, vector<1x64x16xbf16>
      %134 = vector.shape_cast %133 : vector<1x64x16xbf16> to vector<64x16xbf16>
      %135 = vector.shape_cast %132 : vector<64x16xbf16> to vector<1x64x16xbf16>
      tpu.vector_store %arg17[%c3_103, %c0_104, %c0_105], %135 {strides = array<i32>} : memref<4x64x16xbf16, #tpu.memory_space<vmem>>, vector<1x64x16xbf16>,
    } else {
    }
    %c64_i32 = arith.constant 64 : i32
    %3 = arith.muli %arg1, %c64_i32 : i32
    %4 = tpu.assume_multiple %3, 64 : i32
    %5 = arith.index_cast %4 : i32 to index
    %c0 = arith.constant 0 : index
    %6 = vector.load %arg15[%5, %c0] : memref<64x64xbf16, #tpu.memory_space<vmem>>, vector<64x64xbf16>
    %c0_1 = arith.constant 0 : index
    %7 = arith.index_cast %4 : i32 to index
    %c0_2 = arith.constant 0 : index
    %8 = vector.load %arg2[%c0_1, %7, %c0_2] : memref<1x64x64xf32, #tpu.memory_space<vmem>>, vector<1x64x64xf32>
    %9 = vector.shape_cast %8 : vector<1x64x64xf32> to vector<64x64xf32>
    %c0_3 = arith.constant 0 : index
    %c0_4 = arith.constant 0 : index
    %10 = vector.load %arg13[%c0_3, %c0_4] : memref<1x64xf32, #tpu.memory_space<vmem>>, vector<1x64xf32>
    %11 = vector.broadcast %10 : vector<1x64xf32> to vector<64x64xf32>
    %12 = arith.addf %9, %11 : vector<64x64xf32>
    %c0_i32_5 = arith.constant 0 : i32
    %c4_i32 = arith.constant 4 : i32
    %13 = arith.addi %c0_i32_5, %c4_i32 : i32
    %c1_i32 = arith.constant 1 : i32
    %14 = scf.for %arg18 = %c0_i32_5 to %13 step %c1_i32 iter_args(%arg19 = %12) -> (vector<64x64xf32>)  : i32 {
      %18 = arith.index_cast %arg18 : i32 to index
      %c0_10 = arith.constant 0 : index
      %c0_11 = arith.constant 0 : index
      %19 = vector.load %arg6[%18, %c0_10, %c0_11] : memref<4x64x16xbf16, #tpu.memory_space<vmem>>, vector<1x64x16xbf16>
      %20 = vector.shape_cast %19 : vector<1x64x16xbf16> to vector<64x16xbf16>
      %cst = arith.constant dense<0.000000e+00> : vector<64x16xf32>
      %21 = tpu.matmul %6, %20, %cst {dimension_numbers = #tpu.dot_dimension_numbers<[1], [0], [0], [1], [0, 0, 1, 1], [], []>} : vector<64x64xbf16>, vector<64x16xbf16>, vector<64x16xf32> -> vector<64x16xf32>
      %22 = arith.index_cast %arg18 : i32 to index
      %c0_12 = arith.constant 0 : index
      %c0_13 = arith.constant 0 : index
      %23 = vector.load %arg9[%22, %c0_12, %c0_13] : memref<4x1x16xf32, #tpu.memory_space<vmem>>, vector<1x1x16xf32>
      %24 = vector.shape_cast %23 : vector<1x1x16xf32> to vector<1x16xf32>
      %25 = vector.broadcast %24 : vector<1x16xf32> to vector<64x16xf32>
      %26 = arith.addf %21, %25 : vector<64x16xf32>
      %27 = arith.truncf %26 : vector<64x16xf32> to vector<64x16xbf16>
      %28 = arith.index_cast %arg18 : i32 to index
      %c0_14 = arith.constant 0 : index
      %c0_15 = arith.constant 0 : index
      %29 = vector.load %arg16[%28, %c0_14, %c0_15] : memref<4x64x16xbf16, #tpu.memory_space<vmem>>, vector<1x64x16xbf16>
      %30 = vector.shape_cast %29 : vector<1x64x16xbf16> to vector<64x16xbf16>
      %31 = arith.index_cast %arg18 : i32 to index
      %c0_16 = arith.constant 0 : index
      %c0_17 = arith.constant 0 : index
      %32 = vector.load %arg17[%31, %c0_16, %c0_17] : memref<4x64x16xbf16, #tpu.memory_space<vmem>>, vector<1x64x16xbf16>
      %33 = vector.shape_cast %32 : vector<1x64x16xbf16> to vector<64x16xbf16>
      %cst_18 = arith.constant dense<0.000000e+00> : vector<64x64xf32>
      %34 = tpu.matmul %27, %30, %cst_18 {dimension_numbers = #tpu.dot_dimension_numbers<[1], [1], [0], [0], [0, 0, 1, 0], [], []>} : vector<64x16xbf16>, vector<64x16xbf16>, vector<64x64xf32> -> vector<64x64xf32>
      %cst_19 = arith.constant dense<0xFF800000> : vector<64xf32>
      %35 = vector.multi_reduction <maximumf>, %34, %cst_19 [1] : vector<64x64xf32> to vector<64xf32>
      %36 = vector.shape_cast %35 : vector<64xf32> to vector<64x1xf32>
      %37 = vector.broadcast %36 : vector<64x1xf32> to vector<64x64xf32>
      %38 = arith.subf %34, %37 : vector<64x64xf32>
      %39 = math.exp %38 : vector<64x64xf32>
      %cst_20 = arith.constant dense<0.000000e+00> : vector<64xf32>
      %40 = vector.multi_reduction <add>, %39, %cst_20 [1] : vector<64x64xf32> to vector<64xf32>
      %41 = vector.shape_cast %40 : vector<64xf32> to vector<64x1xf32>
      %42 = tpu.reciprocal %41 : vector<64x1xf32> -> vector<64x1xf32>
      %43 = vector.broadcast %42 : vector<64x1xf32> to vector<64x64xf32>
      %44 = arith.mulf %39, %43 : vector<64x64xf32>
      %45 = arith.truncf %44 : vector<64x64xf32> to vector<64x64xbf16>
      %cst_21 = arith.constant dense<0.000000e+00> : vector<64x16xf32>
      %46 = tpu.matmul %45, %33, %cst_21 {dimension_numbers = #tpu.dot_dimension_numbers<[1], [0], [0], [1], [0, 0, 1, 1], [], []>} : vector<64x64xbf16>, vector<64x16xbf16>, vector<64x16xf32> -> vector<64x16xf32>
      %47 = arith.truncf %46 : vector<64x16xf32> to vector<64x16xbf16>
      %48 = arith.index_cast %arg18 : i32 to index
      %c0_22 = arith.constant 0 : index
      %c0_23 = arith.constant 0 : index
      %49 = vector.load %arg12[%48, %c0_22, %c0_23] : memref<4x16x64xbf16, #tpu.memory_space<vmem>>, vector<1x16x64xbf16>
      %50 = vector.shape_cast %49 : vector<1x16x64xbf16> to vector<16x64xbf16>
      %cst_24 = arith.constant dense<0.000000e+00> : vector<64x64xf32>
      %51 = tpu.matmul %47, %50, %cst_24 {dimension_numbers = #tpu.dot_dimension_numbers<[1], [0], [0], [1], [0, 0, 1, 1], [], []>} : vector<64x16xbf16>, vector<16x64xbf16>, vector<64x64xf32> -> vector<64x64xf32>
      %52 = arith.addf %arg19, %51 : vector<64x64xf32>
      scf.yield %52 : vector<64x64xf32>
    }
    %c4_i32_6 = arith.constant 4 : i32
    %c0_7 = arith.constant 0 : index
    %c0_8 = arith.constant 0 : index
    %c0_9 = arith.constant 0 : index
    %15 = vector.load %arg14[%c0_7, %c0_8, %c0_9] : memref<1x64x64xf32, #tpu.memory_space<vmem>>, vector<1x64x64xf32>
    %16 = vector.shape_cast %15 : vector<1x64x64xf32> to vector<64x64xf32>
    %17 = vector.shape_cast %14 : vector<64x64xf32> to vector<1x64x64xf32>
    tpu.vector_store %arg14[%c0_7, %c0_8, %c0_9], %17 {strides = array<i32>} : memref<1x64x64xf32, #tpu.memory_space<vmem>>, vector<1x64x64xf32>,
    return
  }
  func.func @transform_0(%arg0: i32, %arg1: i32) -> (i32, i32, i32) {
    %c0_i32 = arith.constant 0 : i32
    %c0_i32_0 = arith.constant 0 : i32
    %c0_i32_1 = arith.constant 0 : i32
    return %arg0, %c0_i32, %c0_i32_0 : i32, i32, i32
  }
  func.func @transform_1(%arg0: i32, %arg1: i32) -> (i32, i32) {
    %c0_i32 = arith.constant 0 : i32
    %c0_i32_0 = arith.constant 0 : i32
    %c0_i32_1 = arith.constant 0 : i32
    return %c0_i32, %c0_i32_0 : i32, i32
  }
  func.func @transform_2(%arg0: i32, %arg1: i32) -> (i32, i32) {
    %c0_i32 = arith.constant 0 : i32
    %c0_i32_0 = arith.constant 0 : i32
    %c0_i32_1 = arith.constant 0 : i32
    return %c0_i32, %c0_i32_0 : i32, i32
  }
  func.func @transform_3(%arg0: i32, %arg1: i32) -> (i32, i32) {
    %c0_i32 = arith.constant 0 : i32
    %c0_i32_0 = arith.constant 0 : i32
    %c0_i32_1 = arith.constant 0 : i32
    return %c0_i32, %c0_i32_0 : i32, i32
  }
  func.func @transform_4(%arg0: i32, %arg1: i32) -> (i32, i32, i32) {
    %c0_i32 = arith.constant 0 : i32
    %c0_i32_0 = arith.constant 0 : i32
    %c0_i32_1 = arith.constant 0 : i32
    %c0_i32_2 = arith.constant 0 : i32
    return %c0_i32, %c0_i32_0, %c0_i32_1 : i32, i32, i32
  }
  func.func @transform_5(%arg0: i32, %arg1: i32) -> (i32, i32, i32) {
    %c0_i32 = arith.constant 0 : i32
    %c0_i32_0 = arith.constant 0 : i32
    %c0_i32_1 = arith.constant 0 : i32
    %c0_i32_2 = arith.constant 0 : i32
    return %c0_i32, %c0_i32_0, %c0_i32_1 : i32, i32, i32
  }
  func.func @transform_6(%arg0: i32, %arg1: i32) -> (i32, i32, i32) {
    %c0_i32 = arith.constant 0 : i32
    %c0_i32_0 = arith.constant 0 : i32
    %c0_i32_1 = arith.constant 0 : i32
    %c0_i32_2 = arith.constant 0 : i32
    return %c0_i32, %c0_i32_0, %c0_i32_1 : i32, i32, i32
  }
  func.func @transform_7(%arg0: i32, %arg1: i32) -> (i32, i32, i32) {
    %c0_i32 = arith.constant 0 : i32
    %c0_i32_0 = arith.constant 0 : i32
    %c0_i32_1 = arith.constant 0 : i32
    %c0_i32_2 = arith.constant 0 : i32
    return %c0_i32, %c0_i32_0, %c0_i32_1 : i32, i32, i32
  }
  func.func @transform_8(%arg0: i32, %arg1: i32) -> (i32, i32, i32) {
    %c0_i32 = arith.constant 0 : i32
    %c0_i32_0 = arith.constant 0 : i32
    %c0_i32_1 = arith.constant 0 : i32
    %c0_i32_2 = arith.constant 0 : i32
    return %c0_i32, %c0_i32_0, %c0_i32_1 : i32, i32, i32
  }
  func.func @transform_9(%arg0: i32, %arg1: i32) -> (i32, i32, i32) {
    %c0_i32 = arith.constant 0 : i32
    %c0_i32_0 = arith.constant 0 : i32
    %c0_i32_1 = arith.constant 0 : i32
    %c0_i32_2 = arith.constant 0 : i32
    return %c0_i32, %c0_i32_0, %c0_i32_1 : i32, i32, i32
  }
  func.func @transform_10(%arg0: i32, %arg1: i32) -> (i32, i32, i32) {
    %c0_i32 = arith.constant 0 : i32
    %c0_i32_0 = arith.constant 0 : i32
    %c0_i32_1 = arith.constant 0 : i32
    %c0_i32_2 = arith.constant 0 : i32
    return %c0_i32, %c0_i32_0, %c0_i32_1 : i32, i32, i32
  }
  func.func @transform_11(%arg0: i32, %arg1: i32) -> (i32, i32) {
    %c0_i32 = arith.constant 0 : i32
    %c0_i32_0 = arith.constant 0 : i32
    %c0_i32_1 = arith.constant 0 : i32
    return %c0_i32, %c0_i32_0 : i32, i32
  }
  func.func @transform_12(%arg0: i32, %arg1: i32) -> (i32, i32, i32) {
    %c0_i32 = arith.constant 0 : i32
    %c0_i32_0 = arith.constant 0 : i32
    return %arg0, %arg1, %c0_i32 : i32, i32, i32
  }
}

</mosaic_0001>

<llo_original>
// kernel: tpu_custom_call.1
$region0: #{tpu_custom_call.1}
  #allocation0 [shape = 'u32[]', space=smem, size = 0x4, offset = 0x4, fixed_abs, tag = 'smem constant byte address 0x4 - core index']
  #allocation1 [shape = 'u32[144,128]{1,0:T(1,128)}', space=vmem, size = 0x12000, scoped, tag = 'internal scratch']
  #allocation2 [shape = 'bf16[64,64]{1,0:T(16,128)(2,1)}', space=vmem, size = 0x4000, scoped, tag = 'scratch operand']
  #allocation3 [shape = 'bf16[4,64,16]{2,1,0:T(16,128)(2,1)}', space=vmem, size = 0x10000, scoped, tag = 'scratch operand']
  #allocation4 [shape = 'bf16[4,64,16]{2,1,0:T(16,128)(2,1)}', space=vmem, size = 0x10000, scoped, tag = 'scratch operand']
  %s0 = inlined_call_operand.vmem [shape: f32[2,64,64], index: 0, kind: input, shape index: {}]
  %s1 = inlined_call_operand.vmem [shape: f32[64,32], index: 1, kind: input, shape index: {}]
  %s2 = inlined_call_operand.vmem [shape: f32[1,64], index: 2, kind: input, shape index: {}]
  %s3 = inlined_call_operand.vmem [shape: f32[1,64], index: 3, kind: input, shape index: {}]
  %s4 = inlined_call_operand.vmem [shape: bf16[4,64,16], index: 4, kind: input, shape index: {}]
  %s5 = inlined_call_operand.vmem [shape: bf16[4,64,16], index: 5, kind: input, shape index: {}]
  %s6 = inlined_call_operand.vmem [shape: bf16[4,64,16], index: 6, kind: input, shape index: {}]
  %s7 = inlined_call_operand.vmem [shape: f32[4,1,16], index: 7, kind: input, shape index: {}]
  %s8 = inlined_call_operand.vmem [shape: f32[4,1,16], index: 8, kind: input, shape index: {}]
  %s9 = inlined_call_operand.vmem [shape: f32[4,1,16], index: 9, kind: input, shape index: {}]
  %s10 = inlined_call_operand.vmem [shape: bf16[4,16,64], index: 10, kind: input, shape index: {}]
  %s11 = inlined_call_operand.vmem [shape: f32[1,64], index: 11, kind: input, shape index: {}]
  %s12 = inlined_call_operand.hbm [shape: f32[2,64,64], index: 12, kind: output, shape index: {}]
  %s13 = sld [smem:[#allocation0]]
  $region92: #{tpu_custom_call.1} parent=0
    _
  %s15 = ssub.s32 1, %s13
  %s16 = scalar_select 0, %s15, %s13
  $region1: #{tpu_custom_call.1} parent=0
    #allocation5 [shape = 'u8[65536]{0}', space=vmem, size = 0x10000, scoped, tag = 'output window, operand 0']
    #allocation6 [shape = 's32[2]{0}', space=sflag, size = 0x8, scoped, tag = 'scoped memory for tpu_custom_call.1']
    %17 = vsyncpa [#allocation6], 0
    %s18 = scalar_lea.sflag [#allocation6], 1
    %19 = vsyncpa %s18, 0
    loop: start=0, step=1, limit=4
    $region2: #{tpu_custom_call.1} parent=1 // loop_pre_header
      _
    $region3: #{tpu_custom_call.1} parent=1 // loop_header
      %s21 = sphi 0, %s25
      %p22 = scmp.ge.s32.totalorder %s21, 4
      %s28 = sphi 0, %s40
      %s29 = sphi 0, %s36
      %s30 = sphi 0, %s28
      %s31 = sphi 0, %s29
      %s32 = sphi 0, %s30
      %s33 = sphi 0, %s31
      %s43 = sphi 0, %s45
      %s46 = sphi 0, %s43
      %s47 = sphi 0, %s46
      %s63 = sphi 0, %s47
      %s67 = sphi 0, %s67
      %s69 = sphi 0, %s67
      %s70 = sphi 0, %s69
      %s84 = sphi 0, %s70
      %s88 = sphi 0, %s88
      %s90 = sphi 0, %s88
      %s91 = sphi 0, %s90
      %s105 = sphi 0, %s91
      %s109 = sphi 0, %s109
      %s111 = sphi 0, %s109
      %s112 = sphi 0, %s111
      %s126 = sphi 0, %s112
      %s130 = sphi 0, %s130
      %s132 = sphi 0, %s130
      %s133 = sphi 0, %s132
      %s147 = sphi 0, %s133
      %s151 = sphi 0, %s151
      %s153 = sphi 0, %s151
      %s154 = sphi 0, %s153
      %s168 = sphi 0, %s154
      %s172 = sphi 0, %s172
      %s174 = sphi 0, %s172
      %s175 = sphi 0, %s174
      %s189 = sphi 0, %s175
      %s193 = sphi 0, %s193
      %s195 = sphi 0, %s193
      %s196 = sphi 0, %s195
      %s210 = sphi 0, %s196
      %s214 = sphi 0, %s214
      %s216 = sphi 0, %s214
      %s217 = sphi 0, %s216
      %s231 = sphi 0, %s217
      %s235 = sphi 0, %s235
      %s237 = sphi 0, %s235
      %s238 = sphi 0, %s237
      %s252 = sphi 0, %s238
      %s256 = sphi 0, %s256
      %s258 = sphi 0, %s256
      %s259 = sphi 0, %s258
      %s273 = sphi 0, %s259
      %s277 = sphi 0, %s277
      %s279 = sphi 0, %s277
      %s280 = sphi 0, %s279
      %s294 = sphi 0, %s280
      %s302 = sphi 0, %s304
      %s305 = sphi 0, %s302
      %s306 = sphi 0, %s305
      %s322 = sphi 0, %s306
    $region4: #{tpu_custom_call.1} parent=1 // loop_header_branch
      %24 = sbr.rel (%p22) target = $region8
    $region5: #{tpu_custom_call.1} parent=1 // loop_body
      %s26 = ssub.s32 %s21, 1
      %s27 = ssub.s32 %s21, 2
      %s34 = sadd.s32 1, %s29
      %p35 = scmp.ge.s32.totalorder %s34, 1
      %s36 = scalar_select %p35, 0, %s34
      %s37 = sadd.s32 1, %s28
      %s38 = scalar_select %p35, %s37, %s28
      %p39 = scmp.ge.s32.totalorder %s38, 2
      %s40 = scalar_select %p39, 0, %s38
      %s41 = ssub.s32 %s28, %s40
      %p42 = scmp.eq.s32.totalorder %s41, 0
      %s44 = sadd.s32 %s43, 1
      %s45 = scalar_select %p42, %s43, %s44
      %p48 = pneg %p42
      %p49 = scmp.eq.s32.totalorder %s21, 1
      %p50 = por %p48, %p49
      %p51 = scmp.ne.s32.totalorder %s43, %s46
      %p52 = scmp.eq.s32.totalorder %s21, 0
      %p53 = por %p51, %p52
      %p54 = scmp.ne.s32.totalorder %s43, %s46
      %p55 = scmp.eq.s32.totalorder %s26, 1
      %p56 = por %p54, %p55
      %p57 = scmp.ne.s32.totalorder %s46, %s47
      %p58 = scmp.eq.s32.totalorder %s26, 0
      %p59 = por %p57, %p58
      %p60 = scmp.ne.s32.totalorder %s46, %s47
      %p61 = scmp.eq.s32.totalorder %s27, 1
      %p62 = por %p60, %p61
      %p64 = scmp.ne.s32.totalorder %s47, %s63
      %p65 = scmp.eq.s32.totalorder %s27, 0
      %p66 = por %p64, %p65
      %s68 = sadd.s32 %s67, 1
      %p71 = scmp.eq.s32.totalorder %s21, 1
      %p72 = scmp.ne.s32.totalorder %s67, %s69
      %p73 = scmp.eq.s32.totalorder %s21, 0
      %p74 = por %p72, %p73
      %p75 = scmp.ne.s32.totalorder %s67, %s69
      %p76 = scmp.eq.s32.totalorder %s26, 1
      %p77 = por %p75, %p76
      %p78 = scmp.ne.s32.totalorder %s69, %s70
      %p79 = scmp.eq.s32.totalorder %s26, 0
      %p80 = por %p78, %p79
      %p81 = scmp.ne.s32.totalorder %s69, %s70
      %p82 = scmp.eq.s32.totalorder %s27, 1
      %p83 = por %p81, %p82
      %p85 = scmp.ne.s32.totalorder %s70, %s84
      %p86 = scmp.eq.s32.totalorder %s27, 0
      %p87 = por %p85, %p86
      %s89 = sadd.s32 %s88, 1
      %p92 = scmp.eq.s32.totalorder %s21, 1
      %p93 = scmp.ne.s32.totalorder %s88, %s90
      %p94 = scmp.eq.s32.totalorder %s21, 0
      %p95 = por %p93, %p94
      %p96 = scmp.ne.s32.totalorder %s88, %s90
      %p97 = scmp.eq.s32.totalorder %s26, 1
      %p98 = por %p96, %p97
      %p99 = scmp.ne.s32.totalorder %s90, %s91
      %p100 = scmp.eq.s32.totalorder %s26, 0
      %p101 = por %p99, %p100
      %p102 = scmp.ne.s32.totalorder %s90, %s91
      %p103 = scmp.eq.s32.totalorder %s27, 1
      %p104 = por %p102, %p103
      %p106 = scmp.ne.s32.totalorder %s91, %s105
      %p107 = scmp.eq.s32.totalorder %s27, 0
      %p108 = por %p106, %p107
      %s110 = sadd.s32 %s109, 1
      %p113 = scmp.eq.s32.totalorder %s21, 1
      %p114 = scmp.ne.s32.totalorder %s109, %s111
      %p115 = scmp.eq.s32.totalorder %s21, 0
      %p116 = por %p114, %p115
      %p117 = scmp.ne.s32.totalorder %s109, %s111
      %p118 = scmp.eq.s32.totalorder %s26, 1
      %p119 = por %p117, %p118
      %p120 = scmp.ne.s32.totalorder %s111, %s112
      %p121 = scmp.eq.s32.totalorder %s26, 0
      %p122 = por %p120, %p121
      %p123 = scmp.ne.s32.totalorder %s111, %s112
      %p124 = scmp.eq.s32.totalorder %s27, 1
      %p125 = por %p123, %p124
      %p127 = scmp.ne.s32.totalorder %s112, %s126
      %p128 = scmp.eq.s32.totalorder %s27, 0
      %p129 = por %p127, %p128
      %s131 = sadd.s32 %s130, 1
      %p134 = scmp.eq.s32.totalorder %s21, 1
      %p135 = scmp.ne.s32.totalorder %s130, %s132
      %p136 = scmp.eq.s32.totalorder %s21, 0
      %p137 = por %p135, %p136
      %p138 = scmp.ne.s32.totalorder %s130, %s132
      %p139 = scmp.eq.s32.totalorder %s26, 1
      %p140 = por %p138, %p139
      %p141 = scmp.ne.s32.totalorder %s132, %s133
      %p142 = scmp.eq.s32.totalorder %s26, 0
      %p143 = por %p141, %p142
      %p144 = scmp.ne.s32.totalorder %s132, %s133
      %p145 = scmp.eq.s32.totalorder %s27, 1
      %p146 = por %p144, %p145
      %p148 = scmp.ne.s32.totalorder %s133, %s147
      %p149 = scmp.eq.s32.totalorder %s27, 0
      %p150 = por %p148, %p149
      %s152 = sadd.s32 %s151, 1
      %p155 = scmp.eq.s32.totalorder %s21, 1
      %p156 = scmp.ne.s32.totalorder %s151, %s153
      %p157 = scmp.eq.s32.totalorder %s21, 0
      %p158 = por %p156, %p157
      %p159 = scmp.ne.s32.totalorder %s151, %s153
      %p160 = scmp.eq.s32.totalorder %s26, 1
      %p161 = por %p159, %p160
      %p162 = scmp.ne.s32.totalorder %s153, %s154
      %p163 = scmp.eq.s32.totalorder %s26, 0
      %p164 = por %p162, %p163
      %p165 = scmp.ne.s32.totalorder %s153, %s154
      %p166 = scmp.eq.s32.totalorder %s27, 1
      %p167 = por %p165, %p166
      %p169 = scmp.ne.s32.totalorder %s154, %s168
      %p170 = scmp.eq.s32.totalorder %s27, 0
      %p171 = por %p169, %p170
      %s173 = sadd.s32 %s172, 1
      %p176 = scmp.eq.s32.totalorder %s21, 1
      %p177 = scmp.ne.s32.totalorder %s172, %s174
      %p178 = scmp.eq.s32.totalorder %s21, 0
      %p179 = por %p177, %p178
      %p180 = scmp.ne.s32.totalorder %s172, %s174
      %p181 = scmp.eq.s32.totalorder %s26, 1
      %p182 = por %p180, %p181
      %p183 = scmp.ne.s32.totalorder %s174, %s175
      %p184 = scmp.eq.s32.totalorder %s26, 0
      %p185 = por %p183, %p184
      %p186 = scmp.ne.s32.totalorder %s174, %s175
      %p187 = scmp.eq.s32.totalorder %s27, 1
      %p188 = por %p186, %p187
      %p190 = scmp.ne.s32.totalorder %s175, %s189
      %p191 = scmp.eq.s32.totalorder %s27, 0
      %p192 = por %p190, %p191
      %s194 = sadd.s32 %s193, 1
      %p197 = scmp.eq.s32.totalorder %s21, 1
      %p198 = scmp.ne.s32.totalorder %s193, %s195
      %p199 = scmp.eq.s32.totalorder %s21, 0
      %p200 = por %p198, %p199
      %p201 = scmp.ne.s32.totalorder %s193, %s195
      %p202 = scmp.eq.s32.totalorder %s26, 1
      %p203 = por %p201, %p202
      %p204 = scmp.ne.s32.totalorder %s195, %s196
      %p205 = scmp.eq.s32.totalorder %s26, 0
      %p206 = por %p204, %p205
      %p207 = scmp.ne.s32.totalorder %s195, %s196
      %p208 = scmp.eq.s32.totalorder %s27, 1
      %p209 = por %p207, %p208
      %p211 = scmp.ne.s32.totalorder %s196, %s210
      %p212 = scmp.eq.s32.totalorder %s27, 0
      %p213 = por %p211, %p212
      %s215 = sadd.s32 %s214, 1
      %p218 = scmp.eq.s32.totalorder %s21, 1
      %p219 = scmp.ne.s32.totalorder %s214, %s216
      %p220 = scmp.eq.s32.totalorder %s21, 0
      %p221 = por %p219, %p220
      %p222 = scmp.ne.s32.totalorder %s214, %s216
      %p223 = scmp.eq.s32.totalorder %s26, 1
      %p224 = por %p222, %p223
      %p225 = scmp.ne.s32.totalorder %s216, %s217
      %p226 = scmp.eq.s32.totalorder %s26, 0
      %p227 = por %p225, %p226
      %p228 = scmp.ne.s32.totalorder %s216, %s217
      %p229 = scmp.eq.s32.totalorder %s27, 1
      %p230 = por %p228, %p229
      %p232 = scmp.ne.s32.totalorder %s217, %s231
      %p233 = scmp.eq.s32.totalorder %s27, 0
      %p234 = por %p232, %p233
      %s236 = sadd.s32 %s235, 1
      %p239 = scmp.eq.s32.totalorder %s21, 1
      %p240 = scmp.ne.s32.totalorder %s235, %s237
      %p241 = scmp.eq.s32.totalorder %s21, 0
      %p242 = por %p240, %p241
      %p243 = scmp.ne.s32.totalorder %s235, %s237
      %p244 = scmp.eq.s32.totalorder %s26, 1
      %p245 = por %p243, %p244
      %p246 = scmp.ne.s32.totalorder %s237, %s238
      %p247 = scmp.eq.s32.totalorder %s26, 0
      %p248 = por %p246, %p247
      %p249 = scmp.ne.s32.totalorder %s237, %s238
      %p250 = scmp.eq.s32.totalorder %s27, 1
      %p251 = por %p249, %p250
      %p253 = scmp.ne.s32.totalorder %s238, %s252
      %p254 = scmp.eq.s32.totalorder %s27, 0
      %p255 = por %p253, %p254
      %s257 = sadd.s32 %s256, 1
      %p260 = scmp.eq.s32.totalorder %s21, 1
      %p261 = scmp.ne.s32.totalorder %s256, %s258
      %p262 = scmp.eq.s32.totalorder %s21, 0
      %p263 = por %p261, %p262
      %p264 = scmp.ne.s32.totalorder %s256, %s258
      %p265 = scmp.eq.s32.totalorder %s26, 1
      %p266 = por %p264, %p265
      %p267 = scmp.ne.s32.totalorder %s258, %s259
      %p268 = scmp.eq.s32.totalorder %s26, 0
      %p269 = por %p267, %p268
      %p270 = scmp.ne.s32.totalorder %s258, %s259
      %p271 = scmp.eq.s32.totalorder %s27, 1
      %p272 = por %p270, %p271
      %p274 = scmp.ne.s32.totalorder %s259, %s273
      %p275 = scmp.eq.s32.totalorder %s27, 0
      %p276 = por %p274, %p275
      %s278 = sadd.s32 %s277, 1
      %p281 = scmp.eq.s32.totalorder %s21, 1
      %p282 = scmp.ne.s32.totalorder %s277, %s279
      %p283 = scmp.eq.s32.totalorder %s21, 0
      %p284 = por %p282, %p283
      %p285 = scmp.ne.s32.totalorder %s277, %s279
      %p286 = scmp.eq.s32.totalorder %s26, 1
      %p287 = por %p285, %p286
      %p288 = scmp.ne.s32.totalorder %s279, %s280
      %p289 = scmp.eq.s32.totalorder %s26, 0
      %p290 = por %p288, %p289
      %p291 = scmp.ne.s32.totalorder %s279, %s280
      %p292 = scmp.eq.s32.totalorder %s27, 1
      %p293 = por %p291, %p292
      %p295 = scmp.ne.s32.totalorder %s280, %s294
      %p296 = scmp.eq.s32.totalorder %s27, 0
      %p297 = por %p295, %p296
      %s298 = ssub.s32 %s28, %s40
      %s299 = ssub.s32 %s29, %s36
      %s300 = sor.u32 %s298, %s299
      %p301 = scmp.eq.s32.totalorder %s300, 0
      %s303 = sadd.s32 %s302, 1
      %s304 = scalar_select %p301, %s302, %s303
      %p307 = pneg %p301
      %p308 = scmp.eq.s32.totalorder %s21, 1
      %p309 = por %p307, %p308
      %p310 = scmp.ne.s32.totalorder %s302, %s305
      %p311 = scmp.eq.s32.totalorder %s21, 0
      %p312 = por %p310, %p311
      %p313 = scmp.ne.s32.totalorder %s302, %s305
      %p314 = scmp.eq.s32.totalorder %s26, 1
      %p315 = por %p313, %p314
      %p316 = scmp.ne.s32.totalorder %s305, %s306
      %p317 = scmp.eq.s32.totalorder %s26, 0
      %p318 = por %p316, %p317
      %p319 = scmp.ne.s32.totalorder %s305, %s306
      %p320 = scmp.eq.s32.totalorder %s27, 1
      %p321 = por %p319, %p320
      %p323 = scmp.ne.s32.totalorder %s306, %s322
      %p324 = scmp.eq.s32.totalorder %s27, 0
      %p325 = por %p323, %p324
      %p326 = scmp.le.s32.totalorder 1, %s21
      %p327 = scmp.lt.s32.totalorder %s21, 3
      %p328 = pnand %p326, %p327
      %p329 = pneg %p328
      // Predicated region
      $region9: #{tpu_custom_call.1} parent=5 // pred_check
        _
      $region10: #{tpu_custom_call.1} parent=5 // pred_check_branch
        %331 = sbr.rel (%p328) target = $region12
      $region11: #{tpu_custom_call.1} parent=5 // pred_region
        %s332 = ssub.s32 %s21, 1
        // Predicated region
        $region13: #{tpu_custom_call.1} parent=11 // pred_check
          %p333 = pneg %p80
        $region14: #{tpu_custom_call.1} parent=11 // pred_check_branch
          %335 = sbr.rel (%p333) target = $region16
        $region15: #{tpu_custom_call.1} parent=11 // pred_region
          _
        $region16: #{tpu_custom_call.1} parent=11 // pred_fallthru
          _
        // Predicated region
        $region17: #{tpu_custom_call.1} parent=11 // pred_check
          %p336 = pneg %p101
        $region18: #{tpu_custom_call.1} parent=11 // pred_check_branch
          %338 = sbr.rel (%p336) target = $region20
        $region19: #{tpu_custom_call.1} parent=11 // pred_region
          _
        $region20: #{tpu_custom_call.1} parent=11 // pred_fallthru
          _
        // Predicated region
        $region21: #{tpu_custom_call.1} parent=11 // pred_check
          %p339 = pneg %p122
        $region22: #{tpu_custom_call.1} parent=11 // pred_check_branch
          %341 = sbr.rel (%p339) target = $region24
        $region23: #{tpu_custom_call.1} parent=11 // pred_region
          _
        $region24: #{tpu_custom_call.1} parent=11 // pred_fallthru
          _
        // Predicated region
        $region25: #{tpu_custom_call.1} parent=11 // pred_check
          %p342 = pneg %p143
        $region26: #{tpu_custom_call.1} parent=11 // pred_check_branch
          %344 = sbr.rel (%p342) target = $region28
        $region27: #{tpu_custom_call.1} parent=11 // pred_region
          _
        $region28: #{tpu_custom_call.1} parent=11 // pred_fallthru
          _
        // Predicated region
        $region29: #{tpu_custom_call.1} parent=11 // pred_check
          %p345 = pneg %p164
        $region30: #{tpu_custom_call.1} parent=11 // pred_check_branch
          %347 = sbr.rel (%p345) target = $region32
        $region31: #{tpu_custom_call.1} parent=11 // pred_region
          _
        $region32: #{tpu_custom_call.1} parent=11 // pred_fallthru
          _
        // Predicated region
        $region33: #{tpu_custom_call.1} parent=11 // pred_check
          %p348 = pneg %p185
        $region34: #{tpu_custom_call.1} parent=11 // pred_check_branch
          %350 = sbr.rel (%p348) target = $region36
        $region35: #{tpu_custom_call.1} parent=11 // pred_region
          _
        $region36: #{tpu_custom_call.1} parent=11 // pred_fallthru
          _
        // Predicated region
        $region37: #{tpu_custom_call.1} parent=11 // pred_check
          %p351 = pneg %p206
        $region38: #{tpu_custom_call.1} parent=11 // pred_check_branch
          %353 = sbr.rel (%p351) target = $region40
        $region39: #{tpu_custom_call.1} parent=11 // pred_region
          _
        $region40: #{tpu_custom_call.1} parent=11 // pred_fallthru
          _
        // Predicated region
        $region41: #{tpu_custom_call.1} parent=11 // pred_check
          %p354 = pneg %p227
        $region42: #{tpu_custom_call.1} parent=11 // pred_check_branch
          %356 = sbr.rel (%p354) target = $region44
        $region43: #{tpu_custom_call.1} parent=11 // pred_region
          _
        $region44: #{tpu_custom_call.1} parent=11 // pred_fallthru
          _
        // Predicated region
        $region45: #{tpu_custom_call.1} parent=11 // pred_check
          %p357 = pneg %p248
        $region46: #{tpu_custom_call.1} parent=11 // pred_check_branch
          %359 = sbr.rel (%p357) target = $region48
        $region47: #{tpu_custom_call.1} parent=11 // pred_region
          _
        $region48: #{tpu_custom_call.1} parent=11 // pred_fallthru
          _
        // Predicated region
        $region49: #{tpu_custom_call.1} parent=11 // pred_check
          %p360 = pneg %p269
        $region50: #{tpu_custom_call.1} parent=11 // pred_check_branch
          %362 = sbr.rel (%p360) target = $region52
        $region51: #{tpu_custom_call.1} parent=11 // pred_region
          _
        $region52: #{tpu_custom_call.1} parent=11 // pred_fallthru
          _
        // Predicated region
        $region53: #{tpu_custom_call.1} parent=11 // pred_check
          %p363 = pneg %p290
        $region54: #{tpu_custom_call.1} parent=11 // pred_check_branch
          %365 = sbr.rel (%p363) target = $region56
        $region55: #{tpu_custom_call.1} parent=11 // pred_region
          _
        $region56: #{tpu_custom_call.1} parent=11 // pred_fallthru
          _
      $region12: #{tpu_custom_call.1} parent=5 // pred_fallthru
        _
      %p366 = scmp.lt.s32.totalorder %s21, 2
      // Predicated region
      $region57: #{tpu_custom_call.1} parent=5 // pred_check
        %p367 = pneg %p366
      $region58: #{tpu_custom_call.1} parent=5 // pred_check_branch
        %369 = sbr.rel (%p367) target = $region60
      $region59: #{tpu_custom_call.1} parent=5 // pred_region
        // Predicated region
        $region61: #{tpu_custom_call.1} parent=59 // pred_check
          %p370 = pneg %p53
        $region62: #{tpu_custom_call.1} parent=59 // pred_check_branch
          %372 = sbr.rel (%p370) target = $region64
        $region63: #{tpu_custom_call.1} parent=59 // pred_region
          %p373 = scmp.lt.s32.totalorder %s28, 1
          %s374 = scalar_select %p373, %s28, 1
          %s375 = smul.addr %s374, 8
          %s376 = smul.addr %s375, 8
          %s377 = scalar_lea.vmem %s0, %s376
        $region64: #{tpu_custom_call.1} parent=59 // pred_fallthru
          _
      $region60: #{tpu_custom_call.1} parent=5 // pred_fallthru
        _
      %p378 = scmp.le.s32.totalorder 1, %s21
      %p379 = scmp.lt.s32.totalorder %s21, 3
      %p380 = pnand %p378, %p379
      %p381 = pneg %p380
      // Predicated region
      $region65: #{tpu_custom_call.1} parent=5 // pred_check
        _
      $region66: #{tpu_custom_call.1} parent=5 // pred_check_branch
        %383 = sbr.rel (%p380) target = $region68
      $region67: #{tpu_custom_call.1} parent=5 // pred_region
        %s384 = ssub.s32 %s21, 1
        %p385 = scmp.lt.s32.totalorder %s30, 1
        %s386 = scalar_select %p385, %s30, 1
        %s387 = smul.addr %s386, 8
        %s388 = smul.addr %s387, 8
        %s389 = scalar_lea.vmem %s0, %s388
        %p390 = pneg %p59
        %p391 = pneg %p56
        %p392 = pneg %p80
        %p393 = pneg %p77
        %p394 = pneg %p101
        %p395 = pneg %p98
        %p396 = pneg %p122
        %p397 = pneg %p119
        %p398 = pneg %p143
        %p399 = pneg %p140
        %p400 = pneg %p164
        %p401 = pneg %p161
        %p402 = pneg %p185
        %p403 = pneg %p182
        %p404 = pneg %p206
        %p405 = pneg %p203
        %p406 = pneg %p227
        %p407 = pneg %p224
        %p408 = pneg %p248
        %p409 = pneg %p245
        %p410 = pneg %p269
        %p411 = pneg %p266
        %p412 = pneg %p290
        %p413 = pneg %p287
        %p414 = pneg %p318
        %p415 = pneg %p315
        %s416 = sand.u32 %s305, 1
        %s417 = scalar_lea.sflag [#allocation6], %s416
        %s418 = sand.u32 %s305, 1
        %s419 = smul.addr %s418, 64
        %s420 = scalar_lea.vmem [#allocation5], %s419
        %p421 = scmp.lt.s32.totalorder %s30, 1
        %s422 = scalar_select %p421, %s30, 1
        %s423 = smul.addr %s422, 8
        %s424 = smul.addr %s423, 8
        %s425 = scalar_lea.vmem %s0, %s424
        %s426 = smul.u32 8, %s31
        %p428 = scmp.eq.s32.totalorder %s31, 0
        // Predicated region
        $region69: #{tpu_custom_call.1} parent=67 // pred_check
          %p429 = pneg %p428
        $region70: #{tpu_custom_call.1} parent=67 // pred_check_branch
          %431 = sbr.rel (%p429) target = $region72
        $region71: #{tpu_custom_call.1} parent=67 // pred_region
          %v432 = vld [vmem:[%s425] sm:$0xff]
          %v433 = vld [vmem:[%s425 + $0x8] sm:$0xff]
          %v434 = vld [vmem:[%s425 + $0x10] sm:$0xff]
          %v435 = vld [vmem:[%s425 + $0x18] sm:$0xff]
          %v436 = vld [vmem:[%s425 + $0x20] sm:$0xff]
          %v437 = vld [vmem:[%s425 + $0x28] sm:$0xff]
          %v438 = vld [vmem:[%s425 + $0x30] sm:$0xff]
          %v439 = vld [vmem:[%s425 + $0x38] sm:$0xff]
          %v440 = vld [vmem:[%s1] sm:$0xff]
          %v441 = vld [vmem:[%s1 + $0x8] sm:$0xff]
          %v442 = vld [vmem:[%s1 + $0x10] sm:$0xff]
          %v443 = vld [vmem:[%s1 + $0x18] sm:$0xff]
          %v444 = vld [vmem:[%s1 + $0x20] sm:$0xff]
          %v445 = vld [vmem:[%s1 + $0x28] sm:$0xff]
          %v446 = vld [vmem:[%s1 + $0x30] sm:$0xff]
          %v447 = vld [vmem:[%s1 + $0x38] sm:$0xff]
          %vm448 = vcmask 523264
          %v449 = vsel %vm448, %v432, 0.0
          %v450 = vsel %vm448, %v433, 0.0
          %v451 = vadd.f32 %v449, %v450
          %v452 = vsel %vm448, %v434, 0.0
          %v453 = vadd.f32 %v451, %v452
          %v454 = vsel %vm448, %v435, 0.0
          %v455 = vadd.f32 %v453, %v454
          %v456 = vsel %vm448, %v436, 0.0
          %v457 = vadd.f32 %v455, %v456
          %v458 = vsel %vm448, %v437, 0.0
          %v459 = vadd.f32 %v457, %v458
          %v460 = vsel %vm448, %v438, 0.0
          %v461 = vadd.f32 %v459, %v460
          %v462 = vsel %vm448, %v439, 0.0
          %v463 = vadd.f32 %v461, %v462
          %v464 = vrot.slane %v463, 4
          %v465 = vadd.f32 %v463, %v464
          %v466 = vrot.slane %v465, 2
          %v467 = vadd.f32 %v465, %v466
          %v468 = vrot.slane %v467, 1
          %v469 = vadd.f32 %v467, %v468
          %v471 = vsel %vm448, %v469, 0
          %473 = vmatprep.subr.mxu0 0.0
          %474 = vmatpush1.msra.mxu0 %v440
          %475 = vmatprep.subr.mxu0 0.0
          %476 = vmatpush1.msra.mxu0 %v441
          %477 = vmatprep.subr.mxu0 0.0
          %478 = vmatpush1.msra.mxu0 %v442
          %479 = vmatprep.subr.mxu0 0.0
          %480 = vmatpush1.msra.mxu0 %v443
          %481 = vmatprep.subr.mxu0 0.0
          %482 = vmatpush1.msra.mxu0 %v444
          %483 = vmatprep.subr.mxu0 0.0
          %484 = vmatpush1.msra.mxu0 %v445
          %485 = vmatprep.subr.mxu0 0.0
          %486 = vmatpush1.msra.mxu0 %v446
          %487 = vmatprep.subr.mxu0 0.0
          %488 = vmatpush1.msra.mxu0 %v447
          %489 = vmatprep.subr.mxu0 0.0
          %490 = vmatpush1.msra.mxu0 0.0
          %491 = vmatprep.subr.mxu0 0.0
          %492 = vmatpush1.msra.mxu0 0.0
          %493 = vmatprep.subr.mxu0 0.0
          %494 = vmatpush1.msra.mxu0 0.0
          %495 = vmatprep.subr.mxu0 0.0
          %496 = vmatpush1.msra.mxu0 0.0
          %497 = vmatprep.subr.mxu0 0.0
          %498 = vmatpush1.msra.mxu0 0.0
          %499 = vmatprep.subr.mxu0 0.0
          %500 = vmatpush1.msra.mxu0 0.0
          %501 = vmatprep.subr.mxu0 0.0
          %502 = vmatpush1.msra.mxu0 0.0
          %503 = vmatprep.subr.mxu0 0.0
          %504 = vmatpush1.msra.mxu0 0.0
          %505 = vmatprep.subr.mxu0 0.0
          %506 = vmatpush1.msra.mxu0 0.0
          %507 = vmatprep.subr.mxu0 0.0
          %508 = vmatpush1.msra.mxu0 0.0
          %509 = vmatprep.subr.mxu0 0.0
          %510 = vmatpush1.msra.mxu0 0.0
          %511 = vmatprep.subr.mxu0 0.0
          %512 = vmatpush1.msra.mxu0 0.0
          %513 = vmatprep.subr.mxu0 0.0
          %514 = vmatpush1.msra.mxu0 0.0
          %515 = vmatprep.subr.mxu0 0.0
          %516 = vmatpush1.msra.mxu0 0.0
          %517 = vmatprep.subr.mxu0 0.0
          %518 = vmatpush1.msra.mxu0 0.0
          %519 = vmatprep.subr.mxu0 0.0
          %520 = vmatpush1.msra.mxu0 0.0
          %521 = vmatprep.subr.mxu0 0.0
          %522 = vmatpush1.msra.mxu0 0.0
          %523 = vmatprep.subr.mxu0 0.0
          %524 = vmatpush1.msra.mxu0 0.0
          %525 = vmatprep.subr.mxu0 0.0
          %526 = vmatpush1.msra.mxu0 0.0
          %527 = vmatprep.subr.mxu0 0.0
          %528 = vmatpush1.msra.mxu0 0.0
          %529 = vmatprep.subr.mxu0 0.0
          %530 = vmatpush1.msra.mxu0 0.0
          %531 = vmatprep.subr.mxu0 0.0
          %532 = vmatpush1.msra.mxu0 0.0
          %533 = vmatprep.subr.mxu0 0.0
          %534 = vmatpush1.msra.mxu0 0.0
          %535 = vmatprep.subr.mxu0 0.0
          %536 = vmatpush1.msra.mxu0 0.0
          %537 = vmatprep.mubr.f32.mxu0 0.0
          %538 = vmatmul.mubr.f32.gmra.mrb[0].mxu0 %v471
          %v539 = vpop.f32.mrb[0].mxu0
          %v540 = vadd.f32 0.0, %v539
          %v541 = vpop.f32.mrb[0].mxu0
          %542 = vdwg.mxu0
          %v543 = vmul.f32 %v540, 0.0078125
          %vm544 = vcmask 261120
          %v546 = vsel %vm544, %v543, 0
          %v549 = vsel %vm544, %v440, 0
          %v552 = vsel %vm544, %v441, 0
          %v555 = vsel %vm544, %v442, 0
          %v558 = vsel %vm544, %v443, 0
          %v561 = vsel %vm544, %v444, 0
          %v564 = vsel %vm544, %v445, 0
          %v567 = vsel %vm544, %v446, 0
          %v570 = vsel %vm544, %v447, 0
          %572 = vmatprep.subr.mxu0 0.0
          %573 = vmatpush1.xpose.msra.mxu0 %v549
          %574 = vmatprep.subr.mxu0 0.0
          %575 = vmatpush1.xpose.msra.mxu0 %v552
          %576 = vmatprep.subr.mxu0 0.0
          %577 = vmatpush1.xpose.msra.mxu0 %v555
          %578 = vmatprep.subr.mxu0 0.0
          %579 = vmatpush1.xpose.msra.mxu0 %v558
          %580 = vmatprep.subr.mxu0 0.0
          %581 = vmatpush1.xpose.msra.mxu0 %v561
          %582 = vmatprep.subr.mxu0 0.0
          %583 = vmatpush1.xpose.msra.mxu0 %v564
          %584 = vmatprep.subr.mxu0 0.0
          %585 = vmatpush1.xpose.msra.mxu0 %v567
          %586 = vmatprep.subr.mxu0 0.0
          %587 = vmatpush1.xpose.msra.mxu0 %v570
          %588 = vmatprep.subr.mxu0 0.0
          %589 = vmatpush1.xpose.msra.mxu0 0.0
          %590 = vmatprep.subr.mxu0 0.0
          %591 = vmatpush1.xpose.msra.mxu0 0.0
          %592 = vmatprep.subr.mxu0 0.0
          %593 = vmatpush1.xpose.msra.mxu0 0.0
          %594 = vmatprep.subr.mxu0 0.0
          %595 = vmatpush1.xpose.msra.mxu0 0.0
          %596 = vmatprep.subr.mxu0 0.0
          %597 = vmatpush1.xpose.msra.mxu0 0.0
          %598 = vmatprep.subr.mxu0 0.0
          %599 = vmatpush1.xpose.msra.mxu0 0.0
          %600 = vmatprep.subr.mxu0 0.0
          %601 = vmatpush1.xpose.msra.mxu0 0.0
          %602 = vmatprep.subr.mxu0 0.0
          %603 = vmatpush1.xpose.msra.mxu0 0.0
          %604 = vmatprep.subr.mxu0 0.0
          %605 = vmatpush1.xpose.msra.mxu0 0.0
          %606 = vmatprep.subr.mxu0 0.0
          %607 = vmatpush1.xpose.msra.mxu0 0.0
          %608 = vmatprep.subr.mxu0 0.0
          %609 = vmatpush1.xpose.msra.mxu0 0.0
          %610 = vmatprep.subr.mxu0 0.0
          %611 = vmatpush1.xpose.msra.mxu0 0.0
          %612 = vmatprep.subr.mxu0 0.0
          %613 = vmatpush1.xpose.msra.mxu0 0.0
          %614 = vmatprep.subr.mxu0 0.0
          %615 = vmatpush1.xpose.msra.mxu0 0.0
          %616 = vmatprep.subr.mxu0 0.0
          %617 = vmatpush1.xpose.msra.mxu0 0.0
          %618 = vmatprep.subr.mxu0 0.0
          %619 = vmatpush1.xpose.msra.mxu0 0.0
          %620 = vmatprep.subr.mxu0 0.0
          %621 = vmatpush1.xpose.msra.mxu0 0.0
          %622 = vmatprep.subr.mxu0 0.0
          %623 = vmatpush1.xpose.msra.mxu0 0.0
          %624 = vmatprep.subr.mxu0 0.0
          %625 = vmatpush1.xpose.msra.mxu0 0.0
          %626 = vmatprep.subr.mxu0 0.0
          %627 = vmatpush1.xpose.msra.mxu0 0.0
          %628 = vmatprep.subr.mxu0 0.0
          %629 = vmatpush1.xpose.msra.mxu0 0.0
          %630 = vmatprep.subr.mxu0 0.0
          %631 = vmatpush1.xpose.msra.mxu0 0.0
          %632 = vmatprep.subr.mxu0 0.0
          %633 = vmatpush1.xpose.msra.mxu0 0.0
          %634 = vmatprep.subr.mxu0 0.0
          %635 = vmatpush1.xpose.msra.mxu0 0.0
          %636 = vmatprep.mubr.f32.mxu0 0.0
          %637 = vmatmul.mubr.f32.gmra.mrb[0].mxu0 %v546
          %v638 = vpop.f32.mrb[0].mxu0
          %v639 = vadd.f32 0.0, %v638
          %v640 = vpop.f32.mrb[0].mxu0
          %641 = vdwg.mxu0
          %v642 = vlaneseq
          %v643 = vshrl.u32 %v642, 7
          %v644 = vsub.s32 0, %v643
          %v645 = vrot.slane %v639, %v644
          %v646 = vsub.f32 %v432, %v645
          %v647 = vsub.f32 %v433, %v645
          %v648 = vsub.f32 %v434, %v645
          %v649 = vsub.f32 %v435, %v645
          %v650 = vsub.f32 %v436, %v645
          %v651 = vsub.f32 %v437, %v645
          %v652 = vsub.f32 %v438, %v645
          %v653 = vsub.f32 %v439, %v645
          %v654 = vmul.f32 %v646, %v646
          %v655 = vmul.f32 %v647, %v647
          %v656 = vmul.f32 %v648, %v648
          %v657 = vmul.f32 %v649, %v649
          %v658 = vmul.f32 %v650, %v650
          %v659 = vmul.f32 %v651, %v651
          %v660 = vmul.f32 %v652, %v652
          %v661 = vmul.f32 %v653, %v653
          %v662 = vsel %vm448, %v654, 0.0
          %v663 = vsel %vm448, %v655, 0.0
          %v664 = vadd.f32 %v662, %v663
          %v665 = vsel %vm448, %v656, 0.0
          %v666 = vadd.f32 %v664, %v665
          %v667 = vsel %vm448, %v657, 0.0
          %v668 = vadd.f32 %v666, %v667
          %v669 = vsel %vm448, %v658, 0.0
          %v670 = vadd.f32 %v668, %v669
          %v671 = vsel %vm448, %v659, 0.0
          %v672 = vadd.f32 %v670, %v671
          %v673 = vsel %vm448, %v660, 0.0
          %v674 = vadd.f32 %v672, %v673
          %v675 = vsel %vm448, %v661, 0.0
          %v676 = vadd.f32 %v674, %v675
          %v677 = vrot.slane %v676, 4
          %v678 = vadd.f32 %v676, %v677
          %v679 = vrot.slane %v678, 2
          %v680 = vadd.f32 %v678, %v679
          %v681 = vrot.slane %v680, 1
          %v682 = vadd.f32 %v680, %v681
          %v684 = vsel %vm448, %v682, 0
          %686 = vmatprep.subr.mxu0 0.0
          %687 = vmatpush1.msra.mxu0 %v440
          %688 = vmatprep.subr.mxu0 0.0
          %689 = vmatpush1.msra.mxu0 %v441
          %690 = vmatprep.subr.mxu0 0.0
          %691 = vmatpush1.msra.mxu0 %v442
          %692 = vmatprep.subr.mxu0 0.0
          %693 = vmatpush1.msra.mxu0 %v443
          %694 = vmatprep.subr.mxu0 0.0
          %695 = vmatpush1.msra.mxu0 %v444
          %696 = vmatprep.subr.mxu0 0.0
          %697 = vmatpush1.msra.mxu0 %v445
          %698 = vmatprep.subr.mxu0 0.0
          %699 = vmatpush1.msra.mxu0 %v446
          %700 = vmatprep.subr.mxu0 0.0
          %701 = vmatpush1.msra.mxu0 %v447
          %702 = vmatprep.subr.mxu0 0.0
          %703 = vmatpush1.msra.mxu0 0.0
          %704 = vmatprep.subr.mxu0 0.0
          %705 = vmatpush1.msra.mxu0 0.0
          %706 = vmatprep.subr.mxu0 0.0
          %707 = vmatpush1.msra.mxu0 0.0
          %708 = vmatprep.subr.mxu0 0.0
          %709 = vmatpush1.msra.mxu0 0.0
          %710 = vmatprep.subr.mxu0 0.0
          %711 = vmatpush1.msra.mxu0 0.0
          %712 = vmatprep.subr.mxu0 0.0
          %713 = vmatpush1.msra.mxu0 0.0
          %714 = vmatprep.subr.mxu0 0.0
          %715 = vmatpush1.msra.mxu0 0.0
          %716 = vmatprep.subr.mxu0 0.0
          %717 = vmatpush1.msra.mxu0 0.0
          %718 = vmatprep.subr.mxu0 0.0
          %719 = vmatpush1.msra.mxu0 0.0
          %720 = vmatprep.subr.mxu0 0.0
          %721 = vmatpush1.msra.mxu0 0.0
          %722 = vmatprep.subr.mxu0 0.0
          %723 = vmatpush1.msra.mxu0 0.0
          %724 = vmatprep.subr.mxu0 0.0
          %725 = vmatpush1.msra.mxu0 0.0
          %726 = vmatprep.subr.mxu0 0.0
          %727 = vmatpush1.msra.mxu0 0.0
          %728 = vmatprep.subr.mxu0 0.0
          %729 = vmatpush1.msra.mxu0 0.0
          %730 = vmatprep.subr.mxu0 0.0
          %731 = vmatpush1.msra.mxu0 0.0
          %732 = vmatprep.subr.mxu0 0.0
          %733 = vmatpush1.msra.mxu0 0.0
          %734 = vmatprep.subr.mxu0 0.0
          %735 = vmatpush1.msra.mxu0 0.0
          %736 = vmatprep.subr.mxu0 0.0
          %737 = vmatpush1.msra.mxu0 0.0
          %738 = vmatprep.subr.mxu0 0.0
          %739 = vmatpush1.msra.mxu0 0.0
          %740 = vmatprep.subr.mxu0 0.0
          %741 = vmatpush1.msra.mxu0 0.0
          %742 = vmatprep.subr.mxu0 0.0
          %743 = vmatpush1.msra.mxu0 0.0
          %744 = vmatprep.subr.mxu0 0.0
          %745 = vmatpush1.msra.mxu0 0.0
          %746 = vmatprep.subr.mxu0 0.0
          %747 = vmatpush1.msra.mxu0 0.0
          %748 = vmatprep.subr.mxu0 0.0
          %749 = vmatpush1.msra.mxu0 0.0
          %750 = vmatprep.mubr.f32.mxu0 0.0
          %751 = vmatmul.mubr.f32.gmra.mrb[0].mxu0 %v684
          %v752 = vpop.f32.mrb[0].mxu0
          %v753 = vadd.f32 0.0, %v752
          %v754 = vpop.f32.mrb[0].mxu0
          %755 = vdwg.mxu0
          %v756 = vmul.f32 %v753, 0.0078125
          %v757 = vadd.f32 %v756, 1e-05
          %v758 = vrsqrt.pop %v757
          %v760 = vsel %vm544, %v758, 0
          %762 = vmatprep.subr.mxu0 0.0
          %763 = vmatpush1.xpose.msra.mxu0 %v549
          %764 = vmatprep.subr.mxu0 0.0
          %765 = vmatpush1.xpose.msra.mxu0 %v552
          %766 = vmatprep.subr.mxu0 0.0
          %767 = vmatpush1.xpose.msra.mxu0 %v555
          %768 = vmatprep.subr.mxu0 0.0
          %769 = vmatpush1.xpose.msra.mxu0 %v558
          %770 = vmatprep.subr.mxu0 0.0
          %771 = vmatpush1.xpose.msra.mxu0 %v561
          %772 = vmatprep.subr.mxu0 0.0
          %773 = vmatpush1.xpose.msra.mxu0 %v564
          %774 = vmatprep.subr.mxu0 0.0
          %775 = vmatpush1.xpose.msra.mxu0 %v567
          %776 = vmatprep.subr.mxu0 0.0
          %777 = vmatpush1.xpose.msra.mxu0 %v570
          %778 = vmatprep.subr.mxu0 0.0
          %779 = vmatpush1.xpose.msra.mxu0 0.0
          %780 = vmatprep.subr.mxu0 0.0
          %781 = vmatpush1.xpose.msra.mxu0 0.0
          %782 = vmatprep.subr.mxu0 0.0
          %783 = vmatpush1.xpose.msra.mxu0 0.0
          %784 = vmatprep.subr.mxu0 0.0
          %785 = vmatpush1.xpose.msra.mxu0 0.0
          %786 = vmatprep.subr.mxu0 0.0
          %787 = vmatpush1.xpose.msra.mxu0 0.0
          %788 = vmatprep.subr.mxu0 0.0
          %789 = vmatpush1.xpose.msra.mxu0 0.0
          %790 = vmatprep.subr.mxu0 0.0
          %791 = vmatpush1.xpose.msra.mxu0 0.0
          %792 = vmatprep.subr.mxu0 0.0
          %793 = vmatpush1.xpose.msra.mxu0 0.0
          %794 = vmatprep.subr.mxu0 0.0
          %795 = vmatpush1.xpose.msra.mxu0 0.0
          %796 = vmatprep.subr.mxu0 0.0
          %797 = vmatpush1.xpose.msra.mxu0 0.0
          %798 = vmatprep.subr.mxu0 0.0
          %799 = vmatpush1.xpose.msra.mxu0 0.0
          %800 = vmatprep.subr.mxu0 0.0
          %801 = vmatpush1.xpose.msra.mxu0 0.0
          %802 = vmatprep.subr.mxu0 0.0
          %803 = vmatpush1.xpose.msra.mxu0 0.0
          %804 = vmatprep.subr.mxu0 0.0
          %805 = vmatpush1.xpose.msra.mxu0 0.0
          %806 = vmatprep.subr.mxu0 0.0
          %807 = vmatpush1.xpose.msra.mxu0 0.0
          %808 = vmatprep.subr.mxu0 0.0
          %809 = vmatpush1.xpose.msra.mxu0 0.0
          %810 = vmatprep.subr.mxu0 0.0
          %811 = vmatpush1.xpose.msra.mxu0 0.0
          %812 = vmatprep.subr.mxu0 0.0
          %813 = vmatpush1.xpose.msra.mxu0 0.0
          %814 = vmatprep.subr.mxu0 0.0
          %815 = vmatpush1.xpose.msra.mxu0 0.0
          %816 = vmatprep.subr.mxu0 0.0
          %817 = vmatpush1.xpose.msra.mxu0 0.0
          %818 = vmatprep.subr.mxu0 0.0
          %819 = vmatpush1.xpose.msra.mxu0 0.0
          %820 = vmatprep.subr.mxu0 0.0
          %821 = vmatpush1.xpose.msra.mxu0 0.0
          %822 = vmatprep.subr.mxu0 0.0
          %823 = vmatpush1.xpose.msra.mxu0 0.0
          %824 = vmatprep.subr.mxu0 0.0
          %825 = vmatpush1.xpose.msra.mxu0 0.0
          %826 = vmatprep.mubr.f32.mxu0 0.0
          %827 = vmatmul.mubr.f32.gmra.mrb[0].mxu0 %v760
          %v828 = vpop.f32.mrb[0].mxu0
          %v829 = vadd.f32 0.0, %v828
          %v830 = vpop.f32.mrb[0].mxu0
          %831 = vdwg.mxu0
          %v832 = vld [vmem:[%s2] sm:$0x1]
          %v833 = vmul.f32 %v829, %v832
          %v834 = vlaneseq
          %v835 = vshrl.u32 %v834, 7
          %v836 = vsub.s32 0, %v835
          %v837 = vrot.slane %v833, %v836
          %v838 = vmul.f32 %v646, %v837
          %v839 = vmul.f32 %v647, %v837
          %v840 = vmul.f32 %v648, %v837
          %v841 = vmul.f32 %v649, %v837
          %v842 = vmul.f32 %v650, %v837
          %v843 = vmul.f32 %v651, %v837
          %v844 = vmul.f32 %v652, %v837
          %v845 = vmul.f32 %v653, %v837
          %v846 = vld [vmem:[%s3] sm:$0x1]
          %v848 = vlaneseq
          %v849 = vshrl.u32 %v848, 7
          %v850 = vsub.s32 0, %v849
          %v851 = vrot.slane %v846, %v850
          %v853 = vadd.f32 %v838, %v851
          %v854 = vadd.f32 %v839, %v851
          %v855 = vadd.f32 %v840, %v851
          %v856 = vadd.f32 %v841, %v851
          %v857 = vadd.f32 %v842, %v851
          %v858 = vadd.f32 %v843, %v851
          %v859 = vadd.f32 %v844, %v851
          %v860 = vadd.f32 %v845, %v851
          %v861 = vpack.c.bf16 %v854, %v853
          %v862 = vpack.c.bf16 %v856, %v855
          %v863 = vpack.c.bf16 %v858, %v857
          %v864 = vpack.c.bf16 %v860, %v859
          %865 = vst.msk [vmem:[#allocation2] sm:$0xff] %vm448, %v861
          %866 = vst.msk [vmem:[#allocation2 + $0x8] sm:$0xff] %vm448, %v862
          %867 = vst.msk [vmem:[#allocation2 + $0x10] sm:$0xff] %vm448, %v863
          %868 = vst.msk [vmem:[#allocation2 + $0x18] sm:$0xff] %vm448, %v864
          %v869 = vld [vmem:[%s5] sm:$0xf]
          %v870 = vld [vmem:[%s5 + $0x4] sm:$0xf]
          %v871 = vld [vmem:[%s5 + $0x8] sm:$0xf]
          %v872 = vld [vmem:[%s5 + $0xc] sm:$0xf]
          %v873 = vld [vmem:[%s5 + $0x10] sm:$0xf]
          %v874 = vld [vmem:[%s5 + $0x14] sm:$0xf]
          %v875 = vld [vmem:[%s5 + $0x18] sm:$0xf]
          %v876 = vld [vmem:[%s5 + $0x1c] sm:$0xf]
          %v877 = vld [vmem:[%s8] sm:$0x1]
          %v879 = vlaneseq
          %v880 = vshrl.u32 %v879, 7
          %v881 = vsub.s32 0, %v880
          %v882 = vrot.slane %v877, %v881
          %v892 = vunpack.c.l.b16 %v869
          %v893 = vunpack.c.l.b16 %v870
          %v894 = vunpack.c.l.b16 %v871
          %v895 = vunpack.c.l.b16 %v872
          %v896 = vunpack.c.l.b16 %v873
          %v897 = vunpack.c.l.b16 %v874
          %v898 = vunpack.c.l.b16 %v875
          %v899 = vunpack.c.l.b16 %v876
          %v900 = vpack.c.b16 %v893, %v892
          %v901 = vpack.c.b16 %v895, %v894
          %v902 = vpack.c.b16 %v897, %v896
          %v903 = vpack.c.b16 %v899, %v898
          %v909 = vsel %vm448, %v861, 0
          %v912 = vsel %vm448, %v862, 0
          %v915 = vsel %vm448, %v863, 0
          %v918 = vsel %vm448, %v864, 0
          %920 = vmatprep.subr.bf16.mxu0 0
          %921 = vmatpush1.bf16.msra.mxu0 %v900
          %922 = vmatprep.subr.bf16.mxu0 0
          %923 = vmatpush1.bf16.msra.mxu0 %v901
          %924 = vmatprep.subr.bf16.mxu0 0
          %925 = vmatpush1.bf16.msra.mxu0 %v902
          %926 = vmatprep.subr.bf16.mxu0 0
          %927 = vmatpush1.bf16.msra.mxu0 %v903
          %928 = vmatprep.subr.bf16.mxu0 0
          %929 = vmatpush1.bf16.msra.mxu0 0
          %930 = vmatprep.subr.bf16.mxu0 0
          %931 = vmatpush1.bf16.msra.mxu0 0
          %932 = vmatprep.subr.bf16.mxu0 0
          %933 = vmatpush1.bf16.msra.mxu0 0
          %934 = vmatprep.subr.bf16.mxu0 0
          %935 = vmatpush1.bf16.msra.mxu0 0
          %936 = vmatprep.subr.bf16.mxu0 0
          %937 = vmatpush1.bf16.msra.mxu0 0
          %938 = vmatprep.subr.bf16.mxu0 0
          %939 = vmatpush1.bf16.msra.mxu0 0
          %940 = vmatprep.subr.bf16.mxu0 0
          %941 = vmatpush1.bf16.msra.mxu0 0
          %942 = vmatprep.subr.bf16.mxu0 0
          %943 = vmatpush1.bf16.msra.mxu0 0
          %944 = vmatprep.subr.bf16.mxu0 0
          %945 = vmatpush1.bf16.msra.mxu0 0
          %946 = vmatprep.subr.bf16.mxu0 0
          %947 = vmatpush1.bf16.msra.mxu0 0
          %948 = vmatprep.subr.bf16.mxu0 0
          %949 = vmatpush1.bf16.msra.mxu0 0
          %950 = vmatprep.subr.bf16.mxu0 0
          %951 = vmatpush1.bf16.msra.mxu0 0
          %952 = vmatprep.mubr.bf16.mxu0 0
          %953 = vmatmul.mubr.bf16.gmra.mrb[0].mxu0 %v909
          %v954 = vpop.f32.mrb[0].mxu0
          %v955 = vadd.f32 %v882, %v954
          %v956 = vpop.f32.mrb[0].mxu0
          %v957 = vpop.f32.mrb[0].mxu0
          %v958 = vadd.f32 %v882, %v957
          %v959 = vpop.f32.mrb[0].mxu0
          %960 = vmatprep.mubr.bf16.mxu0 0
          %961 = vmatmul.mubr.bf16.gmra.mrb[0].mxu0 %v912
          %v962 = vpop.f32.mrb[0].mxu0
          %v963 = vadd.f32 %v882, %v962
          %v964 = vpop.f32.mrb[0].mxu0
          %v965 = vpop.f32.mrb[0].mxu0
          %v966 = vadd.f32 %v882, %v965
          %v967 = vpop.f32.mrb[0].mxu0
          %968 = vmatprep.mubr.bf16.mxu0 0
          %969 = vmatmul.mubr.bf16.gmra.mrb[0].mxu0 %v915
          %v970 = vpop.f32.mrb[0].mxu0
          %v971 = vadd.f32 %v882, %v970
          %v972 = vpop.f32.mrb[0].mxu0
          %v973 = vpop.f32.mrb[0].mxu0
          %v974 = vadd.f32 %v882, %v973
          %v975 = vpop.f32.mrb[0].mxu0
          %976 = vmatprep.mubr.bf16.mxu0 0
          %977 = vmatmul.mubr.bf16.gmra.mrb[0].mxu0 %v918
          %v978 = vpop.f32.mrb[0].mxu0
          %v979 = vadd.f32 %v882, %v978
          %v980 = vpop.f32.mrb[0].mxu0
          %v981 = vpop.f32.mrb[0].mxu0
          %v982 = vadd.f32 %v882, %v981
          %v983 = vpop.f32.mrb[0].mxu0
          %984 = vdwg.mxu0
          %v985 = vpack.c.bf16 %v958, %v955
          %v986 = vpack.c.bf16 %v966, %v963
          %v987 = vpack.c.bf16 %v974, %v971
          %v988 = vpack.c.bf16 %v982, %v979
          %vm989 = vcmask 130048
          %990 = vst.msk [vmem:[#allocation3] sm:$0xff] %vm989, %v985
          %991 = vst.msk [vmem:[#allocation3 + $0x8] sm:$0xff] %vm989, %v986
          %992 = vst.msk [vmem:[#allocation3 + $0x10] sm:$0xff] %vm989, %v987
          %993 = vst.msk [vmem:[#allocation3 + $0x18] sm:$0xff] %vm989, %v988
          %v994 = vld [vmem:[%s6] sm:$0xf]
          %v995 = vld [vmem:[%s6 + $0x4] sm:$0xf]
          %v996 = vld [vmem:[%s6 + $0x8] sm:$0xf]
          %v997 = vld [vmem:[%s6 + $0xc] sm:$0xf]
          %v998 = vld [vmem:[%s6 + $0x10] sm:$0xf]
          %v999 = vld [vmem:[%s6 + $0x14] sm:$0xf]
          %v1000 = vld [vmem:[%s6 + $0x18] sm:$0xf]
          %v1001 = vld [vmem:[%s6 + $0x1c] sm:$0xf]
          %v1002 = vld [vmem:[%s9] sm:$0x1]
          %v1004 = vlaneseq
          %v1005 = vshrl.u32 %v1004, 7
          %v1006 = vsub.s32 0, %v1005
          %v1007 = vrot.slane %v1002, %v1006
          %v1017 = vunpack.c.l.b16 %v994
          %v1018 = vunpack.c.l.b16 %v995
          %v1019 = vunpack.c.l.b16 %v996
          %v1020 = vunpack.c.l.b16 %v997
          %v1021 = vunpack.c.l.b16 %v998
          %v1022 = vunpack.c.l.b16 %v999
          %v1023 = vunpack.c.l.b16 %v1000
          %v1024 = vunpack.c.l.b16 %v1001
          %v1025 = vpack.c.b16 %v1018, %v1017
          %v1026 = vpack.c.b16 %v1020, %v1019
          %v1027 = vpack.c.b16 %v1022, %v1021
          %v1028 = vpack.c.b16 %v1024, %v1023
          %1033 = vmatprep.subr.bf16.mxu0 0
          %1034 = vmatpush1.bf16.msra.mxu0 %v1025
          %1035 = vmatprep.subr.bf16.mxu0 0
          %1036 = vmatpush1.bf16.msra.mxu0 %v1026
          %1037 = vmatprep.subr.bf16.mxu0 0
          %1038 = vmatpush1.bf16.msra.mxu0 %v1027
          %1039 = vmatprep.subr.bf16.mxu0 0
          %1040 = vmatpush1.bf16.msra.mxu0 %v1028
          %1041 = vmatprep.subr.bf16.mxu0 0
          %1042 = vmatpush1.bf16.msra.mxu0 0
          %1043 = vmatprep.subr.bf16.mxu0 0
          %1044 = vmatpush1.bf16.msra.mxu0 0
          %1045 = vmatprep.subr.bf16.mxu0 0
          %1046 = vmatpush1.bf16.msra.mxu0 0
          %1047 = vmatprep.subr.bf16.mxu0 0
          %1048 = vmatpush1.bf16.msra.mxu0 0
          %1049 = vmatprep.subr.bf16.mxu0 0
          %1050 = vmatpush1.bf16.msra.mxu0 0
          %1051 = vmatprep.subr.bf16.mxu0 0
          %1052 = vmatpush1.bf16.msra.mxu0 0
          %1053 = vmatprep.subr.bf16.mxu0 0
          %1054 = vmatpush1.bf16.msra.mxu0 0
          %1055 = vmatprep.subr.bf16.mxu0 0
          %1056 = vmatpush1.bf16.msra.mxu0 0
          %1057 = vmatprep.subr.bf16.mxu0 0
          %1058 = vmatpush1.bf16.msra.mxu0 0
          %1059 = vmatprep.subr.bf16.mxu0 0
          %1060 = vmatpush1.bf16.msra.mxu0 0
          %1061 = vmatprep.subr.bf16.mxu0 0
          %1062 = vmatpush1.bf16.msra.mxu0 0
          %1063 = vmatprep.subr.bf16.mxu0 0
          %1064 = vmatpush1.bf16.msra.mxu0 0
          %1065 = vmatprep.mubr.bf16.mxu0 0
          %1066 = vmatmul.mubr.bf16.gmra.mrb[0].mxu0 %v909
          %v1067 = vpop.f32.mrb[0].mxu0
          %v1068 = vadd.f32 %v1007, %v1067
          %v1069 = vpop.f32.mrb[0].mxu0
          %v1070 = vpop.f32.mrb[0].mxu0
          %v1071 = vadd.f32 %v1007, %v1070
          %v1072 = vpop.f32.mrb[0].mxu0
          %1073 = vmatprep.mubr.bf16.mxu0 0
          %1074 = vmatmul.mubr.bf16.gmra.mrb[0].mxu0 %v912
          %v1075 = vpop.f32.mrb[0].mxu0
          %v1076 = vadd.f32 %v1007, %v1075
          %v1077 = vpop.f32.mrb[0].mxu0
          %v1078 = vpop.f32.mrb[0].mxu0
          %v1079 = vadd.f32 %v1007, %v1078
          %v1080 = vpop.f32.mrb[0].mxu0
          %1081 = vmatprep.mubr.bf16.mxu0 0
          %1082 = vmatmul.mubr.bf16.gmra.mrb[0].mxu0 %v915
          %v1083 = vpop.f32.mrb[0].mxu0
          %v1084 = vadd.f32 %v1007, %v1083
          %v1085 = vpop.f32.mrb[0].mxu0
          %v1086 = vpop.f32.mrb[0].mxu0
          %v1087 = vadd.f32 %v1007, %v1086
          %v1088 = vpop.f32.mrb[0].mxu0
          %1089 = vmatprep.mubr.bf16.mxu0 0
          %1090 = vmatmul.mubr.bf16.gmra.mrb[0].mxu0 %v918
          %v1091 = vpop.f32.mrb[0].mxu0
          %v1092 = vadd.f32 %v1007, %v1091
          %v1093 = vpop.f32.mrb[0].mxu0
          %v1094 = vpop.f32.mrb[0].mxu0
          %v1095 = vadd.f32 %v1007, %v1094
          %v1096 = vpop.f32.mrb[0].mxu0
          %1097 = vdwg.mxu0
          %v1098 = vpack.c.bf16 %v1071, %v1068
          %v1099 = vpack.c.bf16 %v1079, %v1076
          %v1100 = vpack.c.bf16 %v1087, %v1084
          %v1101 = vpack.c.bf16 %v1095, %v1092
          %1102 = vst.msk [vmem:[#allocation4] sm:$0xff] %vm989, %v1098
          %1103 = vst.msk [vmem:[#allocation4 + $0x8] sm:$0xff] %vm989, %v1099
          %1104 = vst.msk [vmem:[#allocation4 + $0x10] sm:$0xff] %vm989, %v1100
          %1105 = vst.msk [vmem:[#allocation4 + $0x18] sm:$0xff] %vm989, %v1101
          %s1106 = scalar_lea.vmem %s5, 32
          %v1107 = vld [vmem:[%s1106] sm:$0xf]
          %v1108 = vld [vmem:[%s1106 + $0x4] sm:$0xf]
          %v1109 = vld [vmem:[%s1106 + $0x8] sm:$0xf]
          %v1110 = vld [vmem:[%s1106 + $0xc] sm:$0xf]
          %v1111 = vld [vmem:[%s1106 + $0x10] sm:$0xf]
          %v1112 = vld [vmem:[%s1106 + $0x14] sm:$0xf]
          %v1113 = vld [vmem:[%s1106 + $0x18] sm:$0xf]
          %v1114 = vld [vmem:[%s1106 + $0x1c] sm:$0xf]
          %s1115 = scalar_lea.vmem %s8, 1
          %v1116 = vld [vmem:[%s1115] sm:$0x1]
          %v1118 = vlaneseq
          %v1119 = vshrl.u32 %v1118, 7
          %v1120 = vsub.s32 0, %v1119
          %v1121 = vrot.slane %v1116, %v1120
          %v1131 = vunpack.c.l.b16 %v1107
          %v1132 = vunpack.c.l.b16 %v1108
          %v1133 = vunpack.c.l.b16 %v1109
          %v1134 = vunpack.c.l.b16 %v1110
          %v1135 = vunpack.c.l.b16 %v1111
          %v1136 = vunpack.c.l.b16 %v1112
          %v1137 = vunpack.c.l.b16 %v1113
          %v1138 = vunpack.c.l.b16 %v1114
          %v1139 = vpack.c.b16 %v1132, %v1131
          %v1140 = vpack.c.b16 %v1134, %v1133
          %v1141 = vpack.c.b16 %v1136, %v1135
          %v1142 = vpack.c.b16 %v1138, %v1137
          %1147 = vmatprep.subr.bf16.mxu0 0
          %1148 = vmatpush1.bf16.msra.mxu0 %v1139
          %1149 = vmatprep.subr.bf16.mxu0 0
          %1150 = vmatpush1.bf16.msra.mxu0 %v1140
          %1151 = vmatprep.subr.bf16.mxu0 0
          %1152 = vmatpush1.bf16.msra.mxu0 %v1141
          %1153 = vmatprep.subr.bf16.mxu0 0
          %1154 = vmatpush1.bf16.msra.mxu0 %v1142
          %1155 = vmatprep.subr.bf16.mxu0 0
          %1156 = vmatpush1.bf16.msra.mxu0 0
          %1157 = vmatprep.subr.bf16.mxu0 0
          %1158 = vmatpush1.bf16.msra.mxu0 0
          %1159 = vmatprep.subr.bf16.mxu0 0
          %1160 = vmatpush1.bf16.msra.mxu0 0
          %1161 = vmatprep.subr.bf16.mxu0 0
          %1162 = vmatpush1.bf16.msra.mxu0 0
          %1163 = vmatprep.subr.bf16.mxu0 0
          %1164 = vmatpush1.bf16.msra.mxu0 0
          %1165 = vmatprep.subr.bf16.mxu0 0
          %1166 = vmatpush1.bf16.msra.mxu0 0
          %1167 = vmatprep.subr.bf16.mxu0 0
          %1168 = vmatpush1.bf16.msra.mxu0 0
          %1169 = vmatprep.subr.bf16.mxu0 0
          %1170 = vmatpush1.bf16.msra.mxu0 0
          %1171 = vmatprep.subr.bf16.mxu0 0
          %1172 = vmatpush1.bf16.msra.mxu0 0
          %1173 = vmatprep.subr.bf16.mxu0 0
          %1174 = vmatpush1.bf16.msra.mxu0 0
          %1175 = vmatprep.subr.bf16.mxu0 0
          %1176 = vmatpush1.bf16.msra.mxu0 0
          %1177 = vmatprep.subr.bf16.mxu0 0
          %1178 = vmatpush1.bf16.msra.mxu0 0
          %1179 = vmatprep.mubr.bf16.mxu0 0
          %1180 = vmatmul.mubr.bf16.gmra.mrb[0].mxu0 %v909
          %v1181 = vpop.f32.mrb[0].mxu0
          %v1182 = vadd.f32 %v1121, %v1181
          %v1183 = vpop.f32.mrb[0].mxu0
          %v1184 = vpop.f32.mrb[0].mxu0
          %v1185 = vadd.f32 %v1121, %v1184
          %v1186 = vpop.f32.mrb[0].mxu0
          %1187 = vmatprep.mubr.bf16.mxu0 0
          %1188 = vmatmul.mubr.bf16.gmra.mrb[0].mxu0 %v912
          %v1189 = vpop.f32.mrb[0].mxu0
          %v1190 = vadd.f32 %v1121, %v1189
          %v1191 = vpop.f32.mrb[0].mxu0
          %v1192 = vpop.f32.mrb[0].mxu0
          %v1193 = vadd.f32 %v1121, %v1192
          %v1194 = vpop.f32.mrb[0].mxu0
          %1195 = vmatprep.mubr.bf16.mxu0 0
          %1196 = vmatmul.mubr.bf16.gmra.mrb[0].mxu0 %v915
          %v1197 = vpop.f32.mrb[0].mxu0
          %v1198 = vadd.f32 %v1121, %v1197
          %v1199 = vpop.f32.mrb[0].mxu0
          %v1200 = vpop.f32.mrb[0].mxu0
          %v1201 = vadd.f32 %v1121, %v1200
          %v1202 = vpop.f32.mrb[0].mxu0
          %1203 = vmatprep.mubr.bf16.mxu0 0
          %1204 = vmatmul.mubr.bf16.gmra.mrb[0].mxu0 %v918
          %v1205 = vpop.f32.mrb[0].mxu0
          %v1206 = vadd.f32 %v1121, %v1205
          %v1207 = vpop.f32.mrb[0].mxu0
          %v1208 = vpop.f32.mrb[0].mxu0
          %v1209 = vadd.f32 %v1121, %v1208
          %v1210 = vpop.f32.mrb[0].mxu0
          %1211 = vdwg.mxu0
          %v1212 = vpack.c.bf16 %v1185, %v1182
          %v1213 = vpack.c.bf16 %v1193, %v1190
          %v1214 = vpack.c.bf16 %v1201, %v1198
          %v1215 = vpack.c.bf16 %v1209, %v1206
          %s1216 = scalar_lea.vmem [#allocation3], 32
          %1217 = vst.msk [vmem:[%s1216] sm:$0xff] %vm989, %v1212
          %1218 = vst.msk [vmem:[%s1216 + $0x8] sm:$0xff] %vm989, %v1213
          %1219 = vst.msk [vmem:[%s1216 + $0x10] sm:$0xff] %vm989, %v1214
          %1220 = vst.msk [vmem:[%s1216 + $0x18] sm:$0xff] %vm989, %v1215
          %s1221 = scalar_lea.vmem %s6, 32
          %v1222 = vld [vmem:[%s1221] sm:$0xf]
          %v1223 = vld [vmem:[%s1221 + $0x4] sm:$0xf]
          %v1224 = vld [vmem:[%s1221 + $0x8] sm:$0xf]
          %v1225 = vld [vmem:[%s1221 + $0xc] sm:$0xf]
          %v1226 = vld [vmem:[%s1221 + $0x10] sm:$0xf]
          %v1227 = vld [vmem:[%s1221 + $0x14] sm:$0xf]
          %v1228 = vld [vmem:[%s1221 + $0x18] sm:$0xf]
          %v1229 = vld [vmem:[%s1221 + $0x1c] sm:$0xf]
          %s1230 = scalar_lea.vmem %s9, 1
          %v1231 = vld [vmem:[%s1230] sm:$0x1]
          %v1233 = vlaneseq
          %v1234 = vshrl.u32 %v1233, 7
          %v1235 = vsub.s32 0, %v1234
          %v1236 = vrot.slane %v1231, %v1235
          %v1246 = vunpack.c.l.b16 %v1222
          %v1247 = vunpack.c.l.b16 %v1223
          %v1248 = vunpack.c.l.b16 %v1224
          %v1249 = vunpack.c.l.b16 %v1225
          %v1250 = vunpack.c.l.b16 %v1226
          %v1251 = vunpack.c.l.b16 %v1227
          %v1252 = vunpack.c.l.b16 %v1228
          %v1253 = vunpack.c.l.b16 %v1229
          %v1254 = vpack.c.b16 %v1247, %v1246
          %v1255 = vpack.c.b16 %v1249, %v1248
          %v1256 = vpack.c.b16 %v1251, %v1250
          %v1257 = vpack.c.b16 %v1253, %v1252
          %1262 = vmatprep.subr.bf16.mxu0 0
          %1263 = vmatpush1.bf16.msra.mxu0 %v1254
          %1264 = vmatprep.subr.bf16.mxu0 0
          %1265 = vmatpush1.bf16.msra.mxu0 %v1255
          %1266 = vmatprep.subr.bf16.mxu0 0
          %1267 = vmatpush1.bf16.msra.mxu0 %v1256
          %1268 = vmatprep.subr.bf16.mxu0 0
          %1269 = vmatpush1.bf16.msra.mxu0 %v1257
          %1270 = vmatprep.subr.bf16.mxu0 0
          %1271 = vmatpush1.bf16.msra.mxu0 0
          %1272 = vmatprep.subr.bf16.mxu0 0
          %1273 = vmatpush1.bf16.msra.mxu0 0
          %1274 = vmatprep.subr.bf16.mxu0 0
          %1275 = vmatpush1.bf16.msra.mxu0 0
          %1276 = vmatprep.subr.bf16.mxu0 0
          %1277 = vmatpush1.bf16.msra.mxu0 0
          %1278 = vmatprep.subr.bf16.mxu0 0
          %1279 = vmatpush1.bf16.msra.mxu0 0
          %1280 = vmatprep.subr.bf16.mxu0 0
          %1281 = vmatpush1.bf16.msra.mxu0 0
          %1282 = vmatprep.subr.bf16.mxu0 0
          %1283 = vmatpush1.bf16.msra.mxu0 0
          %1284 = vmatprep.subr.bf16.mxu0 0
          %1285 = vmatpush1.bf16.msra.mxu0 0
          %1286 = vmatprep.subr.bf16.mxu0 0
          %1287 = vmatpush1.bf16.msra.mxu0 0
          %1288 = vmatprep.subr.bf16.mxu0 0
          %1289 = vmatpush1.bf16.msra.mxu0 0
          %1290 = vmatprep.subr.bf16.mxu0 0
          %1291 = vmatpush1.bf16.msra.mxu0 0
          %1292 = vmatprep.subr.bf16.mxu0 0
          %1293 = vmatpush1.bf16.msra.mxu0 0
          %1294 = vmatprep.mubr.bf16.mxu0 0
          %1295 = vmatmul.mubr.bf16.gmra.mrb[0].mxu0 %v909
          %v1296 = vpop.f32.mrb[0].mxu0
          %v1297 = vadd.f32 %v1236, %v1296
          %v1298 = vpop.f32.mrb[0].mxu0
          %v1299 = vpop.f32.mrb[0].mxu0
          %v1300 = vadd.f32 %v1236, %v1299
          %v1301 = vpop.f32.mrb[0].mxu0
          %1302 = vmatprep.mubr.bf16.mxu0 0
          %1303 = vmatmul.mubr.bf16.gmra.mrb[0].mxu0 %v912
          %v1304 = vpop.f32.mrb[0].mxu0
          %v1305 = vadd.f32 %v1236, %v1304
          %v1306 = vpop.f32.mrb[0].mxu0
          %v1307 = vpop.f32.mrb[0].mxu0
          %v1308 = vadd.f32 %v1236, %v1307
          %v1309 = vpop.f32.mrb[0].mxu0
          %1310 = vmatprep.mubr.bf16.mxu0 0
          %1311 = vmatmul.mubr.bf16.gmra.mrb[0].mxu0 %v915
          %v1312 = vpop.f32.mrb[0].mxu0
          %v1313 = vadd.f32 %v1236, %v1312
          %v1314 = vpop.f32.mrb[0].mxu0
          %v1315 = vpop.f32.mrb[0].mxu0
          %v1316 = vadd.f32 %v1236, %v1315
          %v1317 = vpop.f32.mrb[0].mxu0
          %1318 = vmatprep.mubr.bf16.mxu0 0
          %1319 = vmatmul.mubr.bf16.gmra.mrb[0].mxu0 %v918
          %v1320 = vpop.f32.mrb[0].mxu0
          %v1321 = vadd.f32 %v1236, %v1320
          %v1322 = vpop.f32.mrb[0].mxu0
          %v1323 = vpop.f32.mrb[0].mxu0
          %v1324 = vadd.f32 %v1236, %v1323
          %v1325 = vpop.f32.mrb[0].mxu0
          %1326 = vdwg.mxu0
          %v1327 = vpack.c.bf16 %v1300, %v1297
          %v1328 = vpack.c.bf16 %v1308, %v1305
          %v1329 = vpack.c.bf16 %v1316, %v1313
          %v1330 = vpack.c.bf16 %v1324, %v1321
          %s1331 = scalar_lea.vmem [#allocation4], 32
          %1332 = vst.msk [vmem:[%s1331] sm:$0xff] %vm989, %v1327
          %1333 = vst.msk [vmem:[%s1331 + $0x8] sm:$0xff] %vm989, %v1328
          %1334 = vst.msk [vmem:[%s1331 + $0x10] sm:$0xff] %vm989, %v1329
          %1335 = vst.msk [vmem:[%s1331 + $0x18] sm:$0xff] %vm989, %v1330
          %s1336 = scalar_lea.vmem %s5, 64
          %v1337 = vld [vmem:[%s1336] sm:$0xf]
          %v1338 = vld [vmem:[%s1336 + $0x4] sm:$0xf]
          %v1339 = vld [vmem:[%s1336 + $0x8] sm:$0xf]
          %v1340 = vld [vmem:[%s1336 + $0xc] sm:$0xf]
          %v1341 = vld [vmem:[%s1336 + $0x10] sm:$0xf]
          %v1342 = vld [vmem:[%s1336 + $0x14] sm:$0xf]
          %v1343 = vld [vmem:[%s1336 + $0x18] sm:$0xf]
          %v1344 = vld [vmem:[%s1336 + $0x1c] sm:$0xf]
          %s1345 = scalar_lea.vmem %s8, 2
          %v1346 = vld [vmem:[%s1345] sm:$0x1]
          %v1348 = vlaneseq
          %v1349 = vshrl.u32 %v1348, 7
          %v1350 = vsub.s32 0, %v1349
          %v1351 = vrot.slane %v1346, %v1350
          %v1361 = vunpack.c.l.b16 %v1337
          %v1362 = vunpack.c.l.b16 %v1338
          %v1363 = vunpack.c.l.b16 %v1339
          %v1364 = vunpack.c.l.b16 %v1340
          %v1365 = vunpack.c.l.b16 %v1341
          %v1366 = vunpack.c.l.b16 %v1342
          %v1367 = vunpack.c.l.b16 %v1343
          %v1368 = vunpack.c.l.b16 %v1344
          %v1369 = vpack.c.b16 %v1362, %v1361
          %v1370 = vpack.c.b16 %v1364, %v1363
          %v1371 = vpack.c.b16 %v1366, %v1365
          %v1372 = vpack.c.b16 %v1368, %v1367
          %1377 = vmatprep.subr.bf16.mxu0 0
          %1378 = vmatpush1.bf16.msra.mxu0 %v1369
          %1379 = vmatprep.subr.bf16.mxu0 0
          %1380 = vmatpush1.bf16.msra.mxu0 %v1370
          %1381 = vmatprep.subr.bf16.mxu0 0
          %1382 = vmatpush1.bf16.msra.mxu0 %v1371
          %1383 = vmatprep.subr.bf16.mxu0 0
          %1384 = vmatpush1.bf16.msra.mxu0 %v1372
          %1385 = vmatprep.subr.bf16.mxu0 0
          %1386 = vmatpush1.bf16.msra.mxu0 0
          %1387 = vmatprep.subr.bf16.mxu0 0
          %1388 = vmatpush1.bf16.msra.mxu0 0
          %1389 = vmatprep.subr.bf16.mxu0 0
          %1390 = vmatpush1.bf16.msra.mxu0 0
          %1391 = vmatprep.subr.bf16.mxu0 0
          %1392 = vmatpush1.bf16.msra.mxu0 0
          %1393 = vmatprep.subr.bf16.mxu0 0
          %1394 = vmatpush1.bf16.msra.mxu0 0
          %1395 = vmatprep.subr.bf16.mxu0 0
          %1396 = vmatpush1.bf16.msra.mxu0 0
          %1397 = vmatprep.subr.bf16.mxu0 0
          %1398 = vmatpush1.bf16.msra.mxu0 0
          %1399 = vmatprep.subr.bf16.mxu0 0
          %1400 = vmatpush1.bf16.msra.mxu0 0
          %1401 = vmatprep.subr.bf16.mxu0 0
          %1402 = vmatpush1.bf16.msra.mxu0 0
          %1403 = vmatprep.subr.bf16.mxu0 0
          %1404 = vmatpush1.bf16.msra.mxu0 0
          %1405 = vmatprep.subr.bf16.mxu0 0
          %1406 = vmatpush1.bf16.msra.mxu0 0
          %1407 = vmatprep.subr.bf16.mxu0 0
          %1408 = vmatpush1.bf16.msra.mxu0 0
          %1409 = vmatprep.mubr.bf16.mxu0 0
          %1410 = vmatmul.mubr.bf16.gmra.mrb[0].mxu0 %v909
          %v1411 = vpop.f32.mrb[0].mxu0
          %v1412 = vadd.f32 %v1351, %v1411
          %v1413 = vpop.f32.mrb[0].mxu0
          %v1414 = vpop.f32.mrb[0].mxu0
          %v1415 = vadd.f32 %v1351, %v1414
          %v1416 = vpop.f32.mrb[0].mxu0
          %1417 = vmatprep.mubr.bf16.mxu0 0
          %1418 = vmatmul.mubr.bf16.gmra.mrb[0].mxu0 %v912
          %v1419 = vpop.f32.mrb[0].mxu0
          %v1420 = vadd.f32 %v1351, %v1419
          %v1421 = vpop.f32.mrb[0].mxu0
          %v1422 = vpop.f32.mrb[0].mxu0
          %v1423 = vadd.f32 %v1351, %v1422
          %v1424 = vpop.f32.mrb[0].mxu0
          %1425 = vmatprep.mubr.bf16.mxu0 0
          %1426 = vmatmul.mubr.bf16.gmra.mrb[0].mxu0 %v915
          %v1427 = vpop.f32.mrb[0].mxu0
          %v1428 = vadd.f32 %v1351, %v1427
          %v1429 = vpop.f32.mrb[0].mxu0
          %v1430 = vpop.f32.mrb[0].mxu0
          %v1431 = vadd.f32 %v1351, %v1430
          %v1432 = vpop.f32.mrb[0].mxu0
          %1433 = vmatprep.mubr.bf16.mxu0 0
          %1434 = vmatmul.mubr.bf16.gmra.mrb[0].mxu0 %v918
          %v1435 = vpop.f32.mrb[0].mxu0
          %v1436 = vadd.f32 %v1351, %v1435
          %v1437 = vpop.f32.mrb[0].mxu0
          %v1438 = vpop.f32.mrb[0].mxu0
          %v1439 = vadd.f32 %v1351, %v1438
          %v1440 = vpop.f32.mrb[0].mxu0
          %1441 = vdwg.mxu0
          %v1442 = vpack.c.bf16 %v1415, %v1412
          %v1443 = vpack.c.bf16 %v1423, %v1420
          %v1444 = vpack.c.bf16 %v1431, %v1428
          %v1445 = vpack.c.bf16 %v1439, %v1436
          %s1446 = scalar_lea.vmem [#allocation3], 64
          %1447 = vst.msk [vmem:[%s1446] sm:$0xff] %vm989, %v1442
          %1448 = vst.msk [vmem:[%s1446 + $0x8] sm:$0xff] %vm989, %v1443
          %1449 = vst.msk [vmem:[%s1446 + $0x10] sm:$0xff] %vm989, %v1444
          %1450 = vst.msk [vmem:[%s1446 + $0x18] sm:$0xff] %vm989, %v1445
          %s1451 = scalar_lea.vmem %s6, 64
          %v1452 = vld [vmem:[%s1451] sm:$0xf]
          %v1453 = vld [vmem:[%s1451 + $0x4] sm:$0xf]
          %v1454 = vld [vmem:[%s1451 + $0x8] sm:$0xf]
          %v1455 = vld [vmem:[%s1451 + $0xc] sm:$0xf]
          %v1456 = vld [vmem:[%s1451 + $0x10] sm:$0xf]
          %v1457 = vld [vmem:[%s1451 + $0x14] sm:$0xf]
          %v1458 = vld [vmem:[%s1451 + $0x18] sm:$0xf]
          %v1459 = vld [vmem:[%s1451 + $0x1c] sm:$0xf]
          %s1460 = scalar_lea.vmem %s9, 2
          %v1461 = vld [vmem:[%s1460] sm:$0x1]
          %v1463 = vlaneseq
          %v1464 = vshrl.u32 %v1463, 7
          %v1465 = vsub.s32 0, %v1464
          %v1466 = vrot.slane %v1461, %v1465
          %v1476 = vunpack.c.l.b16 %v1452
          %v1477 = vunpack.c.l.b16 %v1453
          %v1478 = vunpack.c.l.b16 %v1454
          %v1479 = vunpack.c.l.b16 %v1455
          %v1480 = vunpack.c.l.b16 %v1456
          %v1481 = vunpack.c.l.b16 %v1457
          %v1482 = vunpack.c.l.b16 %v1458
          %v1483 = vunpack.c.l.b16 %v1459
          %v1484 = vpack.c.b16 %v1477, %v1476
          %v1485 = vpack.c.b16 %v1479, %v1478
          %v1486 = vpack.c.b16 %v1481, %v1480
          %v1487 = vpack.c.b16 %v1483, %v1482
          %1492 = vmatprep.subr.bf16.mxu0 0
          %1493 = vmatpush1.bf16.msra.mxu0 %v1484
          %1494 = vmatprep.subr.bf16.mxu0 0
          %1495 = vmatpush1.bf16.msra.mxu0 %v1485
          %1496 = vmatprep.subr.bf16.mxu0 0
          %1497 = vmatpush1.bf16.msra.mxu0 %v1486
          %1498 = vmatprep.subr.bf16.mxu0 0
          %1499 = vmatpush1.bf16.msra.mxu0 %v1487
          %1500 = vmatprep.subr.bf16.mxu0 0
          %1501 = vmatpush1.bf16.msra.mxu0 0
          %1502 = vmatprep.subr.bf16.mxu0 0
          %1503 = vmatpush1.bf16.msra.mxu0 0
          %1504 = vmatprep.subr.bf16.mxu0 0
          %1505 = vmatpush1.bf16.msra.mxu0 0
          %1506 = vmatprep.subr.bf16.mxu0 0
          %1507 = vmatpush1.bf16.msra.mxu0 0
          %1508 = vmatprep.subr.bf16.mxu0 0
          %1509 = vmatpush1.bf16.msra.mxu0 0
          %1510 = vmatprep.subr.bf16.mxu0 0
          %1511 = vmatpush1.bf16.msra.mxu0 0
          %1512 = vmatprep.subr.bf16.mxu0 0
          %1513 = vmatpush1.bf16.msra.mxu0 0
          %1514 = vmatprep.subr.bf16.mxu0 0
          %1515 = vmatpush1.bf16.msra.mxu0 0
          %1516 = vmatprep.subr.bf16.mxu0 0
          %1517 = vmatpush1.bf16.msra.mxu0 0
          %1518 = vmatprep.subr.bf16.mxu0 0
          %1519 = vmatpush1.bf16.msra.mxu0 0
          %1520 = vmatprep.subr.bf16.mxu0 0
          %1521 = vmatpush1.bf16.msra.mxu0 0
          %1522 = vmatprep.subr.bf16.mxu0 0
          %1523 = vmatpush1.bf16.msra.mxu0 0
          %1524 = vmatprep.mubr.bf16.mxu0 0
          %1525 = vmatmul.mubr.bf16.gmra.mrb[0].mxu0 %v909
          %v1526 = vpop.f32.mrb[0].mxu0
          %v1527 = vadd.f32 %v1466, %v1526
          %v1528 = vpop.f32.mrb[0].mxu0
          %v1529 = vpop.f32.mrb[0].mxu0
          %v1530 = vadd.f32 %v1466, %v1529
          %v1531 = vpop.f32.mrb[0].mxu0
          %1532 = vmatprep.mubr.bf16.mxu0 0
          %1533 = vmatmul.mubr.bf16.gmra.mrb[0].mxu0 %v912
          %v1534 = vpop.f32.mrb[0].mxu0
          %v1535 = vadd.f32 %v1466, %v1534
          %v1536 = vpop.f32.mrb[0].mxu0
          %v1537 = vpop.f32.mrb[0].mxu0
          %v1538 = vadd.f32 %v1466, %v1537
          %v1539 = vpop.f32.mrb[0].mxu0
          %1540 = vmatprep.mubr.bf16.mxu0 0
          %1541 = vmatmul.mubr.bf16.gmra.mrb[0].mxu0 %v915
          %v1542 = vpop.f32.mrb[0].mxu0
          %v1543 = vadd.f32 %v1466, %v1542
          %v1544 = vpop.f32.mrb[0].mxu0
          %v1545 = vpop.f32.mrb[0].mxu0
          %v1546 = vadd.f32 %v1466, %v1545
          %v1547 = vpop.f32.mrb[0].mxu0
          %1548 = vmatprep.mubr.bf16.mxu0 0
          %1549 = vmatmul.mubr.bf16.gmra.mrb[0].mxu0 %v918
          %v1550 = vpop.f32.mrb[0].mxu0
          %v1551 = vadd.f32 %v1466, %v1550
          %v1552 = vpop.f32.mrb[0].mxu0
          %v1553 = vpop.f32.mrb[0].mxu0
          %v1554 = vadd.f32 %v1466, %v1553
          %v1555 = vpop.f32.mrb[0].mxu0
          %1556 = vdwg.mxu0
          %v1557 = vpack.c.bf16 %v1530, %v1527
          %v1558 = vpack.c.bf16 %v1538, %v1535
          %v1559 = vpack.c.bf16 %v1546, %v1543
          %v1560 = vpack.c.bf16 %v1554, %v1551
          %s1561 = scalar_lea.vmem [#allocation4], 64
          %1562 = vst.msk [vmem:[%s1561] sm:$0xff] %vm989, %v1557
          %1563 = vst.msk [vmem:[%s1561 + $0x8] sm:$0xff] %vm989, %v1558
          %1564 = vst.msk [vmem:[%s1561 + $0x10] sm:$0xff] %vm989, %v1559
          %1565 = vst.msk [vmem:[%s1561 + $0x18] sm:$0xff] %vm989, %v1560
          %s1566 = scalar_lea.vmem %s5, 96
          %v1567 = vld [vmem:[%s1566] sm:$0xf]
          %v1568 = vld [vmem:[%s1566 + $0x4] sm:$0xf]
          %v1569 = vld [vmem:[%s1566 + $0x8] sm:$0xf]
          %v1570 = vld [vmem:[%s1566 + $0xc] sm:$0xf]
          %v1571 = vld [vmem:[%s1566 + $0x10] sm:$0xf]
          %v1572 = vld [vmem:[%s1566 + $0x14] sm:$0xf]
          %v1573 = vld [vmem:[%s1566 + $0x18] sm:$0xf]
          %v1574 = vld [vmem:[%s1566 + $0x1c] sm:$0xf]
          %s1575 = scalar_lea.vmem %s8, 3
          %v1576 = vld [vmem:[%s1575] sm:$0x1]
          %v1578 = vlaneseq
          %v1579 = vshrl.u32 %v1578, 7
          %v1580 = vsub.s32 0, %v1579
          %v1581 = vrot.slane %v1576, %v1580
          %v1591 = vunpack.c.l.b16 %v1567
          %v1592 = vunpack.c.l.b16 %v1568
          %v1593 = vunpack.c.l.b16 %v1569
          %v1594 = vunpack.c.l.b16 %v1570
          %v1595 = vunpack.c.l.b16 %v1571
          %v1596 = vunpack.c.l.b16 %v1572
          %v1597 = vunpack.c.l.b16 %v1573
          %v1598 = vunpack.c.l.b16 %v1574
          %v1599 = vpack.c.b16 %v1592, %v1591
          %v1600 = vpack.c.b16 %v1594, %v1593
          %v1601 = vpack.c.b16 %v1596, %v1595
          %v1602 = vpack.c.b16 %v1598, %v1597
          %1607 = vmatprep.subr.bf16.mxu0 0
          %1608 = vmatpush1.bf16.msra.mxu0 %v1599
          %1609 = vmatprep.subr.bf16.mxu0 0
          %1610 = vmatpush1.bf16.msra.mxu0 %v1600
          %1611 = vmatprep.subr.bf16.mxu0 0
          %1612 = vmatpush1.bf16.msra.mxu0 %v1601
          %1613 = vmatprep.subr.bf16.mxu0 0
          %1614 = vmatpush1.bf16.msra.mxu0 %v1602
          %1615 = vmatprep.subr.bf16.mxu0 0
          %1616 = vmatpush1.bf16.msra.mxu0 0
          %1617 = vmatprep.subr.bf16.mxu0 0
          %1618 = vmatpush1.bf16.msra.mxu0 0
          %1619 = vmatprep.subr.bf16.mxu0 0
          %1620 = vmatpush1.bf16.msra.mxu0 0
          %1621 = vmatprep.subr.bf16.mxu0 0
          %1622 = vmatpush1.bf16.msra.mxu0 0
          %1623 = vmatprep.subr.bf16.mxu0 0
          %1624 = vmatpush1.bf16.msra.mxu0 0
          %1625 = vmatprep.subr.bf16.mxu0 0
          %1626 = vmatpush1.bf16.msra.mxu0 0
          %1627 = vmatprep.subr.bf16.mxu0 0
          %1628 = vmatpush1.bf16.msra.mxu0 0
          %1629 = vmatprep.subr.bf16.mxu0 0
          %1630 = vmatpush1.bf16.msra.mxu0 0
          %1631 = vmatprep.subr.bf16.mxu0 0
          %1632 = vmatpush1.bf16.msra.mxu0 0
          %1633 = vmatprep.subr.bf16.mxu0 0
          %1634 = vmatpush1.bf16.msra.mxu0 0
          %1635 = vmatprep.subr.bf16.mxu0 0
          %1636 = vmatpush1.bf16.msra.mxu0 0
          %1637 = vmatprep.subr.bf16.mxu0 0
          %1638 = vmatpush1.bf16.msra.mxu0 0
          %1639 = vmatprep.mubr.bf16.mxu0 0
          %1640 = vmatmul.mubr.bf16.gmra.mrb[0].mxu0 %v909
          %v1641 = vpop.f32.mrb[0].mxu0
          %v1642 = vadd.f32 %v1581, %v1641
          %v1643 = vpop.f32.mrb[0].mxu0
          %v1644 = vpop.f32.mrb[0].mxu0
          %v1645 = vadd.f32 %v1581, %v1644
          %v1646 = vpop.f32.mrb[0].mxu0
          %1647 = vmatprep.mubr.bf16.mxu0 0
          %1648 = vmatmul.mubr.bf16.gmra.mrb[0].mxu0 %v912
          %v1649 = vpop.f32.mrb[0].mxu0
          %v1650 = vadd.f32 %v1581, %v1649
          %v1651 = vpop.f32.mrb[0].mxu0
          %v1652 = vpop.f32.mrb[0].mxu0
          %v1653 = vadd.f32 %v1581, %v1652
          %v1654 = vpop.f32.mrb[0].mxu0
          %1655 = vmatprep.mubr.bf16.mxu0 0
          %1656 = vmatmul.mubr.bf16.gmra.mrb[0].mxu0 %v915
          %v1657 = vpop.f32.mrb[0].mxu0
          %v1658 = vadd.f32 %v1581, %v1657
          %v1659 = vpop.f32.mrb[0].mxu0
          %v1660 = vpop.f32.mrb[0].mxu0
          %v1661 = vadd.f32 %v1581, %v1660
          %v1662 = vpop.f32.mrb[0].mxu0
          %1663 = vmatprep.mubr.bf16.mxu0 0
          %1664 = vmatmul.mubr.bf16.gmra.mrb[0].mxu0 %v918
          %v1665 = vpop.f32.mrb[0].mxu0
          %v1666 = vadd.f32 %v1581, %v1665
          %v1667 = vpop.f32.mrb[0].mxu0
          %v1668 = vpop.f32.mrb[0].mxu0
          %v1669 = vadd.f32 %v1581, %v1668
          %v1670 = vpop.f32.mrb[0].mxu0
          %1671 = vdwg.mxu0
          %v1672 = vpack.c.bf16 %v1645, %v1642
          %v1673 = vpack.c.bf16 %v1653, %v1650
          %v1674 = vpack.c.bf16 %v1661, %v1658
          %v1675 = vpack.c.bf16 %v1669, %v1666
          %s1676 = scalar_lea.vmem [#allocation3], 96
          %1677 = vst.msk [vmem:[%s1676] sm:$0xff] %vm989, %v1672
          %1678 = vst.msk [vmem:[%s1676 + $0x8] sm:$0xff] %vm989, %v1673
          %1679 = vst.msk [vmem:[%s1676 + $0x10] sm:$0xff] %vm989, %v1674
          %1680 = vst.msk [vmem:[%s1676 + $0x18] sm:$0xff] %vm989, %v1675
          %s1681 = scalar_lea.vmem %s6, 96
          %v1682 = vld [vmem:[%s1681] sm:$0xf]
          %v1683 = vld [vmem:[%s1681 + $0x4] sm:$0xf]
          %v1684 = vld [vmem:[%s1681 + $0x8] sm:$0xf]
          %v1685 = vld [vmem:[%s1681 + $0xc] sm:$0xf]
          %v1686 = vld [vmem:[%s1681 + $0x10] sm:$0xf]
          %v1687 = vld [vmem:[%s1681 + $0x14] sm:$0xf]
          %v1688 = vld [vmem:[%s1681 + $0x18] sm:$0xf]
          %v1689 = vld [vmem:[%s1681 + $0x1c] sm:$0xf]
          %s1690 = scalar_lea.vmem %s9, 3
          %v1691 = vld [vmem:[%s1690] sm:$0x1]
          %v1693 = vlaneseq
          %v1694 = vshrl.u32 %v1693, 7
          %v1695 = vsub.s32 0, %v1694
          %v1696 = vrot.slane %v1691, %v1695
          %v1706 = vunpack.c.l.b16 %v1682
          %v1707 = vunpack.c.l.b16 %v1683
          %v1708 = vunpack.c.l.b16 %v1684
          %v1709 = vunpack.c.l.b16 %v1685
          %v1710 = vunpack.c.l.b16 %v1686
          %v1711 = vunpack.c.l.b16 %v1687
          %v1712 = vunpack.c.l.b16 %v1688
          %v1713 = vunpack.c.l.b16 %v1689
          %v1714 = vpack.c.b16 %v1707, %v1706
          %v1715 = vpack.c.b16 %v1709, %v1708
          %v1716 = vpack.c.b16 %v1711, %v1710
          %v1717 = vpack.c.b16 %v1713, %v1712
          %1722 = vmatprep.subr.bf16.mxu0 0
          %1723 = vmatpush1.bf16.msra.mxu0 %v1714
          %1724 = vmatprep.subr.bf16.mxu0 0
          %1725 = vmatpush1.bf16.msra.mxu0 %v1715
          %1726 = vmatprep.subr.bf16.mxu0 0
          %1727 = vmatpush1.bf16.msra.mxu0 %v1716
          %1728 = vmatprep.subr.bf16.mxu0 0
          %1729 = vmatpush1.bf16.msra.mxu0 %v1717
          %1730 = vmatprep.subr.bf16.mxu0 0
          %1731 = vmatpush1.bf16.msra.mxu0 0
          %1732 = vmatprep.subr.bf16.mxu0 0
          %1733 = vmatpush1.bf16.msra.mxu0 0
          %1734 = vmatprep.subr.bf16.mxu0 0
          %1735 = vmatpush1.bf16.msra.mxu0 0
          %1736 = vmatprep.subr.bf16.mxu0 0
          %1737 = vmatpush1.bf16.msra.mxu0 0
          %1738 = vmatprep.subr.bf16.mxu0 0
          %1739 = vmatpush1.bf16.msra.mxu0 0
          %1740 = vmatprep.subr.bf16.mxu0 0
          %1741 = vmatpush1.bf16.msra.mxu0 0
          %1742 = vmatprep.subr.bf16.mxu0 0
          %1743 = vmatpush1.bf16.msra.mxu0 0
          %1744 = vmatprep.subr.bf16.mxu0 0
          %1745 = vmatpush1.bf16.msra.mxu0 0
          %1746 = vmatprep.subr.bf16.mxu0 0
          %1747 = vmatpush1.bf16.msra.mxu0 0
          %1748 = vmatprep.subr.bf16.mxu0 0
          %1749 = vmatpush1.bf16.msra.mxu0 0
          %1750 = vmatprep.subr.bf16.mxu0 0
          %1751 = vmatpush1.bf16.msra.mxu0 0
          %1752 = vmatprep.subr.bf16.mxu0 0
          %1753 = vmatpush1.bf16.msra.mxu0 0
          %1754 = vmatprep.mubr.bf16.mxu0 0
          %1755 = vmatmul.mubr.bf16.gmra.mrb[0].mxu0 %v909
          %v1756 = vpop.f32.mrb[0].mxu0
          %v1757 = vadd.f32 %v1696, %v1756
          %v1758 = vpop.f32.mrb[0].mxu0
          %v1759 = vpop.f32.mrb[0].mxu0
          %v1760 = vadd.f32 %v1696, %v1759
          %v1761 = vpop.f32.mrb[0].mxu0
          %1762 = vmatprep.mubr.bf16.mxu0 0
          %1763 = vmatmul.mubr.bf16.gmra.mrb[0].mxu0 %v912
          %v1764 = vpop.f32.mrb[0].mxu0
          %v1765 = vadd.f32 %v1696, %v1764
          %v1766 = vpop.f32.mrb[0].mxu0
          %v1767 = vpop.f32.mrb[0].mxu0
          %v1768 = vadd.f32 %v1696, %v1767
          %v1769 = vpop.f32.mrb[0].mxu0
          %1770 = vmatprep.mubr.bf16.mxu0 0
          %1771 = vmatmul.mubr.bf16.gmra.mrb[0].mxu0 %v915
          %v1772 = vpop.f32.mrb[0].mxu0
          %v1773 = vadd.f32 %v1696, %v1772
          %v1774 = vpop.f32.mrb[0].mxu0
          %v1775 = vpop.f32.mrb[0].mxu0
          %v1776 = vadd.f32 %v1696, %v1775
          %v1777 = vpop.f32.mrb[0].mxu0
          %1778 = vmatprep.mubr.bf16.mxu0 0
          %1779 = vmatmul.mubr.bf16.gmra.mrb[0].mxu0 %v918
          %v1780 = vpop.f32.mrb[0].mxu0
          %v1781 = vadd.f32 %v1696, %v1780
          %v1782 = vpop.f32.mrb[0].mxu0
          %v1783 = vpop.f32.mrb[0].mxu0
          %v1784 = vadd.f32 %v1696, %v1783
          %v1785 = vpop.f32.mrb[0].mxu0
          %1786 = vdwg.mxu0
          %v1787 = vpack.c.bf16 %v1760, %v1757
          %v1788 = vpack.c.bf16 %v1768, %v1765
          %v1789 = vpack.c.bf16 %v1776, %v1773
          %v1790 = vpack.c.bf16 %v1784, %v1781
          %s1791 = scalar_lea.vmem [#allocation4], 96
          %1792 = vst.msk [vmem:[%s1791] sm:$0xff] %vm989, %v1787
          %1793 = vst.msk [vmem:[%s1791 + $0x8] sm:$0xff] %vm989, %v1788
          %1794 = vst.msk [vmem:[%s1791 + $0x10] sm:$0xff] %vm989, %v1789
          %1795 = vst.msk [vmem:[%s1791 + $0x18] sm:$0xff] %vm989, %v1790
        $region72: #{tpu_custom_call.1} parent=67 // pred_fallthru
          _
        %s1796 = smul.u32 %s31, 64
        %s1797 = sshra.s32 %s1796, 4
        %s1798 = sand.u32 %s1796, 15
        %s1799 = smul.addr %s1797, 8
        %s1800 = scalar_lea.vmem [#allocation2], %s1799
        %v1801 = vld [vmem:[%s1800] sm:$0xff]
        %v1802 = vld [vmem:[%s1800 + $0x8] sm:$0xff]
        %v1803 = vld [vmem:[%s1800 + $0x10] sm:$0xff]
        %v1804 = vld [vmem:[%s1800 + $0x18] sm:$0xff]
        %s1805 = scalar_lea.vmem %s425, %s1796
        %v1806 = vld [vmem:[%s1805] sm:$0xff]
        %v1807 = vld [vmem:[%s1805 + $0x8] sm:$0xff]
        %v1808 = vld [vmem:[%s1805 + $0x10] sm:$0xff]
        %v1809 = vld [vmem:[%s1805 + $0x18] sm:$0xff]
        %v1810 = vld [vmem:[%s1805 + $0x20] sm:$0xff]
        %v1811 = vld [vmem:[%s1805 + $0x28] sm:$0xff]
        %v1812 = vld [vmem:[%s1805 + $0x30] sm:$0xff]
        %v1813 = vld [vmem:[%s1805 + $0x38] sm:$0xff]
        %v1814 = vld [vmem:[%s11] sm:$0x1]
        %v1816 = vlaneseq
        %v1817 = vshrl.u32 %v1816, 7
        %v1818 = vsub.s32 0, %v1817
        %v1819 = vrot.slane %v1814, %v1818
        %v1821 = vadd.f32 %v1806, %v1819
        %v1822 = vadd.f32 %v1807, %v1819
        %v1823 = vadd.f32 %v1808, %v1819
        %v1824 = vadd.f32 %v1809, %v1819
        %v1825 = vadd.f32 %v1810, %v1819
        %v1826 = vadd.f32 %v1811, %v1819
        %v1827 = vadd.f32 %v1812, %v1819
        %v1828 = vadd.f32 %v1813, %v1819
        loop: start=0, step=1, limit=4
        $region73: #{tpu_custom_call.1} parent=67 // loop_pre_header
          _
        $region74: #{tpu_custom_call.1} parent=67 // loop_header
          %s1830 = sphi 0, %s1834
          %p1831 = scmp.ge.s32.totalorder %s1830, 4
          %v1835 = vphi %v1821, %v2332
          %v1836 = vphi %v1822, %v2333
          %v1837 = vphi %v1823, %v2334
          %v1838 = vphi %v1824, %v2335
          %v1839 = vphi %v1825, %v2336
          %v1840 = vphi %v1826, %v2337
          %v1841 = vphi %v1827, %v2338
          %v1842 = vphi %v1828, %v2339
        $region75: #{tpu_custom_call.1} parent=67 // loop_header_branch
          %1833 = sbr.rel (%p1831) target = $region79
        $region76: #{tpu_custom_call.1} parent=67 // loop_body
          %s1843 = smul.u32 %s1830, 8
          %s1844 = smul.addr %s1843, 4
          %s1845 = scalar_lea.vmem %s4, %s1844
          %v1846 = vld [vmem:[%s1845] sm:$0xf]
          %v1847 = vld [vmem:[%s1845 + $0x4] sm:$0xf]
          %v1848 = vld [vmem:[%s1845 + $0x8] sm:$0xf]
          %v1849 = vld [vmem:[%s1845 + $0xc] sm:$0xf]
          %v1850 = vld [vmem:[%s1845 + $0x10] sm:$0xf]
          %v1851 = vld [vmem:[%s1845 + $0x14] sm:$0xf]
          %v1852 = vld [vmem:[%s1845 + $0x18] sm:$0xf]
          %v1853 = vld [vmem:[%s1845 + $0x1c] sm:$0xf]
          %s1854 = scalar_lea.vmem %s7, %s1830
          %v1855 = vld [vmem:[%s1854] sm:$0x1]
          %v1857 = vlaneseq
          %v1858 = vshrl.u32 %v1857, 7
          %v1859 = vsub.s32 0, %v1858
          %v1860 = vrot.slane %v1855, %v1859
          %v1870 = vunpack.c.l.b16 %v1846
          %v1871 = vunpack.c.l.b16 %v1847
          %v1872 = vunpack.c.l.b16 %v1848
          %v1873 = vunpack.c.l.b16 %v1849
          %v1874 = vunpack.c.l.b16 %v1850
          %v1875 = vunpack.c.l.b16 %v1851
          %v1876 = vunpack.c.l.b16 %v1852
          %v1877 = vunpack.c.l.b16 %v1853
          %v1878 = vpack.c.b16 %v1871, %v1870
          %v1879 = vpack.c.b16 %v1873, %v1872
          %v1880 = vpack.c.b16 %v1875, %v1874
          %v1881 = vpack.c.b16 %v1877, %v1876
          %vm1886 = vcmask 523264
          %v1888 = vsel %vm1886, %v1801, 0
          %v1891 = vsel %vm1886, %v1802, 0
          %v1894 = vsel %vm1886, %v1803, 0
          %v1897 = vsel %vm1886, %v1804, 0
          %1899 = vmatprep.subr.bf16.mxu0 0
          %1900 = vmatpush1.bf16.msra.mxu0 %v1878
          %1901 = vmatprep.subr.bf16.mxu0 0
          %1902 = vmatpush1.bf16.msra.mxu0 %v1879
          %1903 = vmatprep.subr.bf16.mxu0 0
          %1904 = vmatpush1.bf16.msra.mxu0 %v1880
          %1905 = vmatprep.subr.bf16.mxu0 0
          %1906 = vmatpush1.bf16.msra.mxu0 %v1881
          %1907 = vmatprep.subr.bf16.mxu0 0
          %1908 = vmatpush1.bf16.msra.mxu0 0
          %1909 = vmatprep.subr.bf16.mxu0 0
          %1910 = vmatpush1.bf16.msra.mxu0 0
          %1911 = vmatprep.subr.bf16.mxu0 0
          %1912 = vmatpush1.bf16.msra.mxu0 0
          %1913 = vmatprep.subr.bf16.mxu0 0
          %1914 = vmatpush1.bf16.msra.mxu0 0
          %1915 = vmatprep.subr.bf16.mxu0 0
          %1916 = vmatpush1.bf16.msra.mxu0 0
          %1917 = vmatprep.subr.bf16.mxu0 0
          %1918 = vmatpush1.bf16.msra.mxu0 0
          %1919 = vmatprep.subr.bf16.mxu0 0
          %1920 = vmatpush1.bf16.msra.mxu0 0
          %1921 = vmatprep.subr.bf16.mxu0 0
          %1922 = vmatpush1.bf16.msra.mxu0 0
          %1923 = vmatprep.subr.bf16.mxu0 0
          %1924 = vmatpush1.bf16.msra.mxu0 0
          %1925 = vmatprep.subr.bf16.mxu0 0
          %1926 = vmatpush1.bf16.msra.mxu0 0
          %1927 = vmatprep.subr.bf16.mxu0 0
          %1928 = vmatpush1.bf16.msra.mxu0 0
          %1929 = vmatprep.subr.bf16.mxu0 0
          %1930 = vmatpush1.bf16.msra.mxu0 0
          %1931 = vmatprep.mubr.bf16.mxu0 0
          %1932 = vmatmul.mubr.bf16.gmra.mrb[0].mxu0 %v1888
          %v1933 = vpop.f32.mrb[0].mxu0
          %v1934 = vadd.f32 %v1860, %v1933
          %v1935 = vpop.f32.mrb[0].mxu0
          %v1936 = vpop.f32.mrb[0].mxu0
          %v1937 = vadd.f32 %v1860, %v1936
          %v1938 = vpop.f32.mrb[0].mxu0
          %1939 = vmatprep.mubr.bf16.mxu0 0
          %1940 = vmatmul.mubr.bf16.gmra.mrb[0].mxu0 %v1891
          %v1941 = vpop.f32.mrb[0].mxu0
          %v1942 = vadd.f32 %v1860, %v1941
          %v1943 = vpop.f32.mrb[0].mxu0
          %v1944 = vpop.f32.mrb[0].mxu0
          %v1945 = vadd.f32 %v1860, %v1944
          %v1946 = vpop.f32.mrb[0].mxu0
          %1947 = vmatprep.mubr.bf16.mxu0 0
          %1948 = vmatmul.mubr.bf16.gmra.mrb[0].mxu0 %v1894
          %v1949 = vpop.f32.mrb[0].mxu0
          %v1950 = vadd.f32 %v1860, %v1949
          %v1951 = vpop.f32.mrb[0].mxu0
          %v1952 = vpop.f32.mrb[0].mxu0
          %v1953 = vadd.f32 %v1860, %v1952
          %v1954 = vpop.f32.mrb[0].mxu0
          %1955 = vmatprep.mubr.bf16.mxu0 0
          %1956 = vmatmul.mubr.bf16.gmra.mrb[0].mxu0 %v1897
          %v1957 = vpop.f32.mrb[0].mxu0
          %v1958 = vadd.f32 %v1860, %v1957
          %v1959 = vpop.f32.mrb[0].mxu0
          %v1960 = vpop.f32.mrb[0].mxu0
          %v1961 = vadd.f32 %v1860, %v1960
          %v1962 = vpop.f32.mrb[0].mxu0
          %1963 = vdwg.mxu0
          %v1964 = vpack.c.bf16 %v1937, %v1934
          %v1965 = vpack.c.bf16 %v1945, %v1942
          %v1966 = vpack.c.bf16 %v1953, %v1950
          %v1967 = vpack.c.bf16 %v1961, %v1958
          %s1968 = smul.u32 %s1830, 4
          %s1969 = smul.addr %s1968, 8
          %s1970 = scalar_lea.vmem [#allocation3], %s1969
          %v1971 = vld [vmem:[%s1970] sm:$0xff]
          %v1972 = vld [vmem:[%s1970 + $0x8] sm:$0xff]
          %v1973 = vld [vmem:[%s1970 + $0x10] sm:$0xff]
          %v1974 = vld [vmem:[%s1970 + $0x18] sm:$0xff]
          %s1975 = smul.addr %s1968, 8
          %s1976 = scalar_lea.vmem [#allocation4], %s1975
          %v1977 = vld [vmem:[%s1976] sm:$0xff]
          %v1978 = vld [vmem:[%s1976 + $0x8] sm:$0xff]
          %v1979 = vld [vmem:[%s1976 + $0x10] sm:$0xff]
          %v1980 = vld [vmem:[%s1976 + $0x18] sm:$0xff]
          %vm1981 = vcmask 130048
          %v1983 = vsel %vm1981, %v1964, 0
          %v1986 = vsel %vm1981, %v1965, 0
          %v1989 = vsel %vm1981, %v1966, 0
          %v1992 = vsel %vm1981, %v1967, 0
          %v1995 = vsel %vm1981, %v1971, 0
          %v1998 = vsel %vm1981, %v1972, 0
          %v2001 = vsel %vm1981, %v1973, 0
          %v2004 = vsel %vm1981, %v1974, 0
          %2006 = vmatprep.subr.bf16.mxu0 0
          %2007 = vmatpush1.bf16.xpose.msra.mxu0 %v1995
          %2008 = vmatprep.subr.bf16.mxu0 0
          %2009 = vmatpush1.bf16.xpose.msra.mxu0 %v1998
          %2010 = vmatprep.subr.bf16.mxu0 0
          %2011 = vmatpush1.bf16.xpose.msra.mxu0 %v2001
          %2012 = vmatprep.subr.bf16.mxu0 0
          %2013 = vmatpush1.bf16.xpose.msra.mxu0 %v2004
          %2014 = vmatprep.subr.bf16.mxu0 0
          %2015 = vmatpush1.bf16.xpose.msra.mxu0 0
          %2016 = vmatprep.subr.bf16.mxu0 0
          %2017 = vmatpush1.bf16.xpose.msra.mxu0 0
          %2018 = vmatprep.subr.bf16.mxu0 0
          %2019 = vmatpush1.bf16.xpose.msra.mxu0 0
          %2020 = vmatprep.subr.bf16.mxu0 0
          %2021 = vmatpush1.bf16.xpose.msra.mxu0 0
          %2022 = vmatprep.subr.bf16.mxu0 0
          %2023 = vmatpush1.bf16.xpose.msra.mxu0 0
          %2024 = vmatprep.subr.bf16.mxu0 0
          %2025 = vmatpush1.bf16.xpose.msra.mxu0 0
          %2026 = vmatprep.subr.bf16.mxu0 0
          %2027 = vmatpush1.bf16.xpose.msra.mxu0 0
          %2028 = vmatprep.subr.bf16.mxu0 0
          %2029 = vmatpush1.bf16.xpose.msra.mxu0 0
          %2030 = vmatprep.subr.bf16.mxu0 0
          %2031 = vmatpush1.bf16.xpose.msra.mxu0 0
          %2032 = vmatprep.subr.bf16.mxu0 0
          %2033 = vmatpush1.bf16.xpose.msra.mxu0 0
          %2034 = vmatprep.subr.bf16.mxu0 0
          %2035 = vmatpush1.bf16.xpose.msra.mxu0 0
          %2036 = vmatprep.subr.bf16.mxu0 0
          %2037 = vmatpush1.bf16.xpose.msra.mxu0 0
          %2038 = vmatprep.mubr.bf16.mxu0 0
          %2039 = vmatmul.mubr.bf16.gmra.mrb[0].mxu0 %v1983
          %v2040 = vpop.f32.mrb[0].mxu0
          %v2041 = vadd.f32 0.0, %v2040
          %v2042 = vpop.f32.mrb[0].mxu0
          %v2043 = vpop.f32.mrb[0].mxu0
          %v2044 = vadd.f32 0.0, %v2043
          %v2045 = vpop.f32.mrb[0].mxu0
          %2046 = vmatprep.mubr.bf16.mxu0 0
          %2047 = vmatmul.mubr.bf16.gmra.mrb[0].mxu0 %v1986
          %v2048 = vpop.f32.mrb[0].mxu0
          %v2049 = vadd.f32 0.0, %v2048
          %v2050 = vpop.f32.mrb[0].mxu0
          %v2051 = vpop.f32.mrb[0].mxu0
          %v2052 = vadd.f32 0.0, %v2051
          %v2053 = vpop.f32.mrb[0].mxu0
          %2054 = vmatprep.mubr.bf16.mxu0 0
          %2055 = vmatmul.mubr.bf16.gmra.mrb[0].mxu0 %v1989
          %v2056 = vpop.f32.mrb[0].mxu0
          %v2057 = vadd.f32 0.0, %v2056
          %v2058 = vpop.f32.mrb[0].mxu0
          %v2059 = vpop.f32.mrb[0].mxu0
          %v2060 = vadd.f32 0.0, %v2059
          %v2061 = vpop.f32.mrb[0].mxu0
          %2062 = vmatprep.mubr.bf16.mxu0 0
          %2063 = vmatmul.mubr.bf16.gmra.mrb[0].mxu0 %v1992
          %v2064 = vpop.f32.mrb[0].mxu0
          %v2065 = vadd.f32 0.0, %v2064
          %v2066 = vpop.f32.mrb[0].mxu0
          %v2067 = vpop.f32.mrb[0].mxu0
          %v2068 = vadd.f32 0.0, %v2067
          %v2069 = vpop.f32.mrb[0].mxu0
          %2070 = vdwg.mxu0
          %v2071 = vsel %vm1886, %v2041, -inf
          %2072 = vmax.xlane.f32.xlu0 %v2071
          %v2073 = vpop.xlane.xlu0 %2072
          %v2074 = vsel %vm1886, %v2044, -inf
          %2075 = vmax.xlane.f32.xlu0 %v2074
          %v2076 = vpop.xlane.xlu0 %2075
          %v2077 = vsel %vm1886, %v2049, -inf
          %2078 = vmax.xlane.f32.xlu0 %v2077
          %v2079 = vpop.xlane.xlu0 %2078
          %v2080 = vsel %vm1886, %v2052, -inf
          %2081 = vmax.xlane.f32.xlu0 %v2080
          %v2082 = vpop.xlane.xlu0 %2081
          %v2083 = vsel %vm1886, %v2057, -inf
          %2084 = vmax.xlane.f32.xlu0 %v2083
          %v2085 = vpop.xlane.xlu0 %2084
          %v2086 = vsel %vm1886, %v2060, -inf
          %2087 = vmax.xlane.f32.xlu0 %v2086
          %v2088 = vpop.xlane.xlu0 %2087
          %v2089 = vsel %vm1886, %v2065, -inf
          %2090 = vmax.xlane.f32.xlu0 %v2089
          %v2091 = vpop.xlane.xlu0 %2090
          %v2092 = vsel %vm1886, %v2068, -inf
          %2093 = vmax.xlane.f32.xlu0 %v2092
          %v2094 = vpop.xlane.xlu0 %2093
          %v2095 = vsub.f32 %v2041, %v2073
          %v2096 = vsub.f32 %v2044, %v2076
          %v2097 = vsub.f32 %v2049, %v2079
          %v2098 = vsub.f32 %v2052, %v2082
          %v2099 = vsub.f32 %v2057, %v2085
          %v2100 = vsub.f32 %v2060, %v2088
          %v2101 = vsub.f32 %v2065, %v2091
          %v2102 = vsub.f32 %v2068, %v2094
          %v2103 = vmul.f32 %v2095, 1.442695
          %v2104 = vpow.pop %v2103
          %v2105 = vmul.f32 %v2096, 1.442695
          %v2106 = vpow.pop %v2105
          %v2107 = vmul.f32 %v2097, 1.442695
          %v2108 = vpow.pop %v2107
          %v2109 = vmul.f32 %v2098, 1.442695
          %v2110 = vpow.pop %v2109
          %v2111 = vmul.f32 %v2099, 1.442695
          %v2112 = vpow.pop %v2111
          %v2113 = vmul.f32 %v2100, 1.442695
          %v2114 = vpow.pop %v2113
          %v2115 = vmul.f32 %v2101, 1.442695
          %v2116 = vpow.pop %v2115
          %v2117 = vmul.f32 %v2102, 1.442695
          %v2118 = vpow.pop %v2117
          %v2119 = vsel %vm1886, %v2104, 0.0
          %2120 = vadd.xlane.f32.xlu0 %v2119
          %v2121 = vpop.xlane.xlu0 %2120
          %v2122 = vsel %vm1886, %v2106, 0.0
          %2123 = vadd.xlane.f32.xlu0 %v2122
          %v2124 = vpop.xlane.xlu0 %2123
          %v2125 = vsel %vm1886, %v2108, 0.0
          %2126 = vadd.xlane.f32.xlu0 %v2125
          %v2127 = vpop.xlane.xlu0 %2126
          %v2128 = vsel %vm1886, %v2110, 0.0
          %2129 = vadd.xlane.f32.xlu0 %v2128
          %v2130 = vpop.xlane.xlu0 %2129
          %v2131 = vsel %vm1886, %v2112, 0.0
          %2132 = vadd.xlane.f32.xlu0 %v2131
          %v2133 = vpop.xlane.xlu0 %2132
          %v2134 = vsel %vm1886, %v2114, 0.0
          %2135 = vadd.xlane.f32.xlu0 %v2134
          %v2136 = vpop.xlane.xlu0 %2135
          %v2137 = vsel %vm1886, %v2116, 0.0
          %2138 = vadd.xlane.f32.xlu0 %v2137
          %v2139 = vpop.xlane.xlu0 %2138
          %v2140 = vsel %vm1886, %v2118, 0.0
          %2141 = vadd.xlane.f32.xlu0 %v2140
          %v2142 = vpop.xlane.xlu0 %2141
          %v2143 = vrcp.pop %v2121
          %v2144 = vrcp.pop %v2124
          %v2145 = vrcp.pop %v2127
          %v2146 = vrcp.pop %v2130
          %v2147 = vrcp.pop %v2133
          %v2148 = vrcp.pop %v2136
          %v2149 = vrcp.pop %v2139
          %v2150 = vrcp.pop %v2142
          %v2151 = vmul.f32 %v2104, %v2143
          %v2152 = vmul.f32 %v2106, %v2144
          %v2153 = vmul.f32 %v2108, %v2145
          %v2154 = vmul.f32 %v2110, %v2146
          %v2155 = vmul.f32 %v2112, %v2147
          %v2156 = vmul.f32 %v2114, %v2148
          %v2157 = vmul.f32 %v2116, %v2149
          %v2158 = vmul.f32 %v2118, %v2150
          %v2159 = vpack.c.bf16 %v2152, %v2151
          %v2160 = vpack.c.bf16 %v2154, %v2153
          %v2161 = vpack.c.bf16 %v2156, %v2155
          %v2162 = vpack.c.bf16 %v2158, %v2157
          %v2164 = vsel %vm1886, %v2159, 0
          %v2167 = vsel %vm1886, %v2160, 0
          %v2170 = vsel %vm1886, %v2161, 0
          %v2173 = vsel %vm1886, %v2162, 0
          %2175 = vmatprep.subr.bf16.mxu0 0
          %2176 = vmatpush1.bf16.msra.mxu0 %v1977
          %2177 = vmatprep.subr.bf16.mxu0 0
          %2178 = vmatpush1.bf16.msra.mxu0 %v1978
          %2179 = vmatprep.subr.bf16.mxu0 0
          %2180 = vmatpush1.bf16.msra.mxu0 %v1979
          %2181 = vmatprep.subr.bf16.mxu0 0
          %2182 = vmatpush1.bf16.msra.mxu0 %v1980
          %2183 = vmatprep.subr.bf16.mxu0 0
          %2184 = vmatpush1.bf16.msra.mxu0 0
          %2185 = vmatprep.subr.bf16.mxu0 0
          %2186 = vmatpush1.bf16.msra.mxu0 0
          %2187 = vmatprep.subr.bf16.mxu0 0
          %2188 = vmatpush1.bf16.msra.mxu0 0
          %2189 = vmatprep.subr.bf16.mxu0 0
          %2190 = vmatpush1.bf16.msra.mxu0 0
          %2191 = vmatprep.subr.bf16.mxu0 0
          %2192 = vmatpush1.bf16.msra.mxu0 0
          %2193 = vmatprep.subr.bf16.mxu0 0
          %2194 = vmatpush1.bf16.msra.mxu0 0
          %2195 = vmatprep.subr.bf16.mxu0 0
          %2196 = vmatpush1.bf16.msra.mxu0 0
          %2197 = vmatprep.subr.bf16.mxu0 0
          %2198 = vmatpush1.bf16.msra.mxu0 0
          %2199 = vmatprep.subr.bf16.mxu0 0
          %2200 = vmatpush1.bf16.msra.mxu0 0
          %2201 = vmatprep.subr.bf16.mxu0 0
          %2202 = vmatpush1.bf16.msra.mxu0 0
          %2203 = vmatprep.subr.bf16.mxu0 0
          %2204 = vmatpush1.bf16.msra.mxu0 0
          %2205 = vmatprep.subr.bf16.mxu0 0
          %2206 = vmatpush1.bf16.msra.mxu0 0
          %2207 = vmatprep.mubr.bf16.mxu0 0
          %2208 = vmatmul.mubr.bf16.gmra.mrb[0].mxu0 %v2164
          %v2209 = vpop.f32.mrb[0].mxu0
          %v2210 = vadd.f32 0.0, %v2209
          %v2211 = vpop.f32.mrb[0].mxu0
          %v2212 = vpop.f32.mrb[0].mxu0
          %v2213 = vadd.f32 0.0, %v2212
          %v2214 = vpop.f32.mrb[0].mxu0
          %2215 = vmatprep.mubr.bf16.mxu0 0
          %2216 = vmatmul.mubr.bf16.gmra.mrb[0].mxu0 %v2167
          %v2217 = vpop.f32.mrb[0].mxu0
          %v2218 = vadd.f32 0.0, %v2217
          %v2219 = vpop.f32.mrb[0].mxu0
          %v2220 = vpop.f32.mrb[0].mxu0
          %v2221 = vadd.f32 0.0, %v2220
          %v2222 = vpop.f32.mrb[0].mxu0
          %2223 = vmatprep.mubr.bf16.mxu0 0
          %2224 = vmatmul.mubr.bf16.gmra.mrb[0].mxu0 %v2170
          %v2225 = vpop.f32.mrb[0].mxu0
          %v2226 = vadd.f32 0.0, %v2225
          %v2227 = vpop.f32.mrb[0].mxu0
          %v2228 = vpop.f32.mrb[0].mxu0
          %v2229 = vadd.f32 0.0, %v2228
          %v2230 = vpop.f32.mrb[0].mxu0
          %2231 = vmatprep.mubr.bf16.mxu0 0
          %2232 = vmatmul.mubr.bf16.gmra.mrb[0].mxu0 %v2173
          %v2233 = vpop.f32.mrb[0].mxu0
          %v2234 = vadd.f32 0.0, %v2233
          %v2235 = vpop.f32.mrb[0].mxu0
          %v2236 = vpop.f32.mrb[0].mxu0
          %v2237 = vadd.f32 0.0, %v2236
          %v2238 = vpop.f32.mrb[0].mxu0
          %2239 = vdwg.mxu0
          %v2240 = vpack.c.bf16 %v2213, %v2210
          %v2241 = vpack.c.bf16 %v2221, %v2218
          %v2242 = vpack.c.bf16 %v2229, %v2226
          %v2243 = vpack.c.bf16 %v2237, %v2234
          %s2244 = smul.u32 %s1830, 2
          %s2245 = smul.addr %s2244, 4
          %s2246 = scalar_lea.vmem %s10, %s2245
          %v2247 = vld [vmem:[%s2246] sm:$0xf]
          %v2248 = vld [vmem:[%s2246 + $0x4] sm:$0xf]
          %v2251 = vunpack.c.l.b16 %v2247
          %v2252 = vunpack.c.l.b16 %v2248
          %v2253 = vpack.c.b16 %v2252, %v2251
          %v2256 = vsel %vm1981, %v2240, 0
          %v2259 = vsel %vm1981, %v2241, 0
          %v2262 = vsel %vm1981, %v2242, 0
          %v2265 = vsel %vm1981, %v2243, 0
          %2267 = vmatprep.subr.bf16.mxu0 0
          %2268 = vmatpush1.bf16.msra.mxu0 %v2253
          %2269 = vmatprep.subr.bf16.mxu0 0
          %2270 = vmatpush1.bf16.msra.mxu0 0
          %2271 = vmatprep.subr.bf16.mxu0 0
          %2272 = vmatpush1.bf16.msra.mxu0 0
          %2273 = vmatprep.subr.bf16.mxu0 0
          %2274 = vmatpush1.bf16.msra.mxu0 0
          %2275 = vmatprep.subr.bf16.mxu0 0
          %2276 = vmatpush1.bf16.msra.mxu0 0
          %2277 = vmatprep.subr.bf16.mxu0 0
          %2278 = vmatpush1.bf16.msra.mxu0 0
          %2279 = vmatprep.subr.bf16.mxu0 0
          %2280 = vmatpush1.bf16.msra.mxu0 0
          %2281 = vmatprep.subr.bf16.mxu0 0
          %2282 = vmatpush1.bf16.msra.mxu0 0
          %2283 = vmatprep.subr.bf16.mxu0 0
          %2284 = vmatpush1.bf16.msra.mxu0 0
          %2285 = vmatprep.subr.bf16.mxu0 0
          %2286 = vmatpush1.bf16.msra.mxu0 0
          %2287 = vmatprep.subr.bf16.mxu0 0
          %2288 = vmatpush1.bf16.msra.mxu0 0
          %2289 = vmatprep.subr.bf16.mxu0 0
          %2290 = vmatpush1.bf16.msra.mxu0 0
          %2291 = vmatprep.subr.bf16.mxu0 0
          %2292 = vmatpush1.bf16.msra.mxu0 0
          %2293 = vmatprep.subr.bf16.mxu0 0
          %2294 = vmatpush1.bf16.msra.mxu0 0
          %2295 = vmatprep.subr.bf16.mxu0 0
          %2296 = vmatpush1.bf16.msra.mxu0 0
          %2297 = vmatprep.subr.bf16.mxu0 0
          %2298 = vmatpush1.bf16.msra.mxu0 0
          %2299 = vmatprep.mubr.bf16.mxu0 0
          %2300 = vmatmul.mubr.bf16.gmra.mrb[0].mxu0 %v2256
          %v2301 = vpop.f32.mrb[0].mxu0
          %v2302 = vadd.f32 0.0, %v2301
          %v2303 = vpop.f32.mrb[0].mxu0
          %v2304 = vpop.f32.mrb[0].mxu0
          %v2305 = vadd.f32 0.0, %v2304
          %v2306 = vpop.f32.mrb[0].mxu0
          %2307 = vmatprep.mubr.bf16.mxu0 0
          %2308 = vmatmul.mubr.bf16.gmra.mrb[0].mxu0 %v2259
          %v2309 = vpop.f32.mrb[0].mxu0
          %v2310 = vadd.f32 0.0, %v2309
          %v2311 = vpop.f32.mrb[0].mxu0
          %v2312 = vpop.f32.mrb[0].mxu0
          %v2313 = vadd.f32 0.0, %v2312
          %v2314 = vpop.f32.mrb[0].mxu0
          %2315 = vmatprep.mubr.bf16.mxu0 0
          %2316 = vmatmul.mubr.bf16.gmra.mrb[0].mxu0 %v2262
          %v2317 = vpop.f32.mrb[0].mxu0
          %v2318 = vadd.f32 0.0, %v2317
          %v2319 = vpop.f32.mrb[0].mxu0
          %v2320 = vpop.f32.mrb[0].mxu0
          %v2321 = vadd.f32 0.0, %v2320
          %v2322 = vpop.f32.mrb[0].mxu0
          %2323 = vmatprep.mubr.bf16.mxu0 0
          %2324 = vmatmul.mubr.bf16.gmra.mrb[0].mxu0 %v2265
          %v2325 = vpop.f32.mrb[0].mxu0
          %v2326 = vadd.f32 0.0, %v2325
          %v2327 = vpop.f32.mrb[0].mxu0
          %v2328 = vpop.f32.mrb[0].mxu0
          %v2329 = vadd.f32 0.0, %v2328
          %v2330 = vpop.f32.mrb[0].mxu0
          %2331 = vdwg.mxu0
          %v2332 = vadd.f32 %v1835, %v2302
          %v2333 = vadd.f32 %v1836, %v2305
          %v2334 = vadd.f32 %v1837, %v2310
          %v2335 = vadd.f32 %v1838, %v2313
          %v2336 = vadd.f32 %v1839, %v2318
          %v2337 = vadd.f32 %v1840, %v2321
          %v2338 = vadd.f32 %v1841, %v2326
          %v2339 = vadd.f32 %v1842, %v2329
        $region77: #{tpu_custom_call.1} parent=67 // loop_footer
          %s1834 = sadd.s32 1, %s1830
        $region78: #{tpu_custom_call.1} parent=67 // loop_footer_branch
          %1829 = sbr.rel target = $region74
        $region79: #{tpu_custom_call.1} parent=67 // loop_exit
          _
        %vm2340 = vcmask 523264
        %2341 = vst.msk [vmem:[%s420] sm:$0xff] %vm2340, %v1835
        %2342 = vst.msk [vmem:[%s420 + $0x8] sm:$0xff] %vm2340, %v1836
        %2343 = vst.msk [vmem:[%s420 + $0x10] sm:$0xff] %vm2340, %v1837
        %2344 = vst.msk [vmem:[%s420 + $0x18] sm:$0xff] %vm2340, %v1838
        %2345 = vst.msk [vmem:[%s420 + $0x20] sm:$0xff] %vm2340, %v1839
        %2346 = vst.msk [vmem:[%s420 + $0x28] sm:$0xff] %vm2340, %v1840
        %2347 = vst.msk [vmem:[%s420 + $0x30] sm:$0xff] %vm2340, %v1841
        %2348 = vst.msk [vmem:[%s420 + $0x38] sm:$0xff] %vm2340, %v1842
        %s2349 = sand.u32 %s305, 1
        %s2350 = scalar_lea.sflag [#allocation6], %s2349
        %s2351 = sand.u32 %s305, 1
        %s2352 = smul.addr %s2351, 64
        %s2353 = scalar_lea.vmem [#allocation5], %s2352
        // Predicated region
        $region80: #{tpu_custom_call.1} parent=67 // pred_check
          %p2354 = pneg %p315
        $region81: #{tpu_custom_call.1} parent=67 // pred_check_branch
          %2356 = sbr.rel (%p2354) target = $region83
        $region82: #{tpu_custom_call.1} parent=67 // pred_region
          %s2357 = smul.u32 8, %s31
          %s2359 = ssub.s32 1024, 1024
          %2360 = vsyncadd %s2350, %s2359
          %s2361 = smul.addr %s30, 8
          %s2362 = sadd.s32 %s2357, %s2361
          %s2363 = smul.addr %s2362, 128
          %s2364 = scalar_lea.hbm %s12, %s2363
          %s2365 = sshll.u32 %s2353, 4
          %s2366 = int_to_ptr.vmem [resolvable:$true] %s2365
          %2371 = dma.vmem_to_hbm [thread:$0]  %s2366, 1024, %s2364, %s2350, 128, 128, 8
        $region83: #{tpu_custom_call.1} parent=67 // pred_fallthru
          _
      $region68: #{tpu_custom_call.1} parent=5 // pred_fallthru
        _
      %p2372 = scmp.le.s32.totalorder 2, %s21
      // Predicated region
      $region84: #{tpu_custom_call.1} parent=5 // pred_check
        %p2373 = pneg %p2372
      $region85: #{tpu_custom_call.1} parent=5 // pred_check_branch
        %2375 = sbr.rel (%p2373) target = $region87
      $region86: #{tpu_custom_call.1} parent=5 // pred_region
        %s2376 = ssub.s32 %s21, 2
        // Predicated region
        $region88: #{tpu_custom_call.1} parent=86 // pred_check
          %p2377 = pneg %p321
        $region89: #{tpu_custom_call.1} parent=86 // pred_check_branch
          %2379 = sbr.rel (%p2377) target = $region91
        $region90: #{tpu_custom_call.1} parent=86 // pred_region
          %s2380 = sand.u32 %s306, 1
          %s2381 = scalar_lea.sflag [#allocation6], %s2380
          %s2382 = sand.u32 %s306, 1
          %s2383 = smul.addr %s2382, 64
          %s2384 = scalar_lea.vmem [#allocation5], %s2383
          %2385 = dma.done %s2381, 1024
        $region91: #{tpu_custom_call.1} parent=86 // pred_fallthru
          _
      $region87: #{tpu_custom_call.1} parent=5 // pred_fallthru
        _
    $region6: #{tpu_custom_call.1} parent=1 // loop_footer
      %s25 = sadd.s32 1, %s21
    $region7: #{tpu_custom_call.1} parent=1 // loop_footer_branch
      %20 = sbr.rel target = $region3
    $region8: #{tpu_custom_call.1} parent=1 // loop_exit
      _
    %2386 = vsyncpa [#allocation6], 1
    %s2387 = scalar_lea.sflag [#allocation6], 1
    %2388 = vsyncpa %s2387, 1

</llo_original>
